<compile_context>
chip_gen: v5e
topology: v5e:2x2
jax: 0.10.0
libtpu: 0.0.40
codegen_flags: <defaults>
</compile_context>

<pallas_src>
import jax
import jax.numpy as jnp
from jax.experimental import pallas as pl
from jax.experimental.pallas import tpu as pltpu


def _conv1x1_kernel(w_ref, x_ref, o_ref):
    # w_ref: (Cout, Cin) bf16   x_ref: (1, Cin, HW_blk) bf16
    # o_ref: (1, Cout, HW_blk) f32
    o_ref[0] = jnp.dot(
        w_ref[...], x_ref[0], preferred_element_type=jnp.float32
    ).astype(o_ref.dtype)


def _pick_hw_block(hw: int, cin: int, cout: int, itemsize: int) -> int:
    """Full-HW slab when it comfortably fits in VMEM, else lane-dense tiles.

    At (Cin=960, HW=196, bf16) the slab is ~0.4 MB so this always returns `hw`
    for the shapes this module sees; the tiling path only kicks in if the
    kernel is reused with much larger spatial extents (keeps v7x's 64 MiB VMEM
    safe without changing behaviour here).
    """
    # Double-buffered input + output slabs per grid step.
    budget = 8 * 1024 * 1024
    if (cin + cout) * hw * itemsize * 2 <= budget:
        return hw
    blk = 512
    while blk * 2 <= hw and (cin + cout) * (blk * 2) * itemsize * 2 <= budget:
        blk *= 2
    return blk


def conv2d_1x1(x_nchw: jax.Array, w_oihw: jax.Array,
               compute_dtype=jnp.bfloat16) -> jax.Array:
    """1x1 conv, stride 1, no bias.

    x_nchw: (N, Cin, H, W), w_oihw: (Cout, Cin, 1, 1) or (Cout, Cin).
    Returns (N, Cout, H, W) in float32 (matching the PyTorch module's output
    dtype); the matmul operands are cast to `compute_dtype` (bf16 by default)
    since the kernel is HBM-bandwidth bound.
    """
    n, cin, h, w = x_nchw.shape
    cout = w_oihw.shape[0]
    hw = h * w
    out_dtype = jnp.float32

    # Free reshapes (contiguous views) + dtype cast (fused into the producer by
    # XLA; the kernel itself then reads half the bytes).
    x3 = x_nchw.reshape(n, cin, hw).astype(compute_dtype)
    w_mat = w_oihw.reshape(cout, cin).astype(compute_dtype)

    in_itemsize = jnp.dtype(compute_dtype).itemsize
    out_itemsize = jnp.dtype(out_dtype).itemsize

    hw_blk = _pick_hw_block(hw, cin, cout, in_itemsize)
    n_hw_blocks = pl.cdiv(hw, hw_blk)

    cost = pl.CostEstimate(
        flops=2 * n * cout * cin * hw,
        transcendentals=0,
        bytes_accessed=(n * cin * hw + cout * cin) * in_itemsize
        + n * cout * hw * out_itemsize,
    )

    y3 = pl.pallas_call(
        _conv1x1_kernel,
        out_shape=jax.ShapeDtypeStruct((n, cout, hw), out_dtype),
        grid=(n, n_hw_blocks),
        in_specs=[
            # Weight: full (Cout, Cin); constant block index -> DMA'd once.
            pl.BlockSpec((cout, cin), lambda b, j: (0, 0)),
            # Activation slab for image b, HW tile j (full HW at this size).
            pl.BlockSpec((1, cin, hw_blk), lambda b, j: (b, 0, j)),
        ],
        out_specs=pl.BlockSpec((1, cout, hw_blk), lambda b, j: (b, 0, j)),
        compiler_params=pltpu.CompilerParams(
            dimension_semantics=("parallel", "parallel"),
        ),
        cost_estimate=cost,
    )(w_mat, x3)

    # Free view back to NCHW.
    return y3.reshape(n, cout, h, w)


if __name__ == "__main__":
    key = jax.random.PRNGKey(0)
    kx, kw = jax.random.split(key)

    # Shapes implied by the module: input (1, 960, 14, 14), weight (160, 960, 1, 1)
    x = jax.random.normal(kx, (1, 960, 14, 14), dtype=jnp.float32)
    w = jax.random.normal(kw, (160, 960, 1, 1), dtype=jnp.float32) * 0.02

    y = conv2d_1x1(x, w)
    jax.block_until_ready(y)
    assert y.shape == (1, 160, 14, 14), y.shape
    assert y.dtype == jnp.float32, y.dtype

    # Reference 1: bf16-operand contraction with f32 accumulation (matches the
    # kernel's numerics) — tight tolerance.
    y_ref_bf16 = jnp.einsum(
        "nchw,oc->nohw",
        x.astype(jnp.bfloat16),
        w.reshape(160, 960).astype(jnp.bfloat16),
        preferred_element_type=jnp.float32,
    )
    assert jnp.allclose(y, y_ref_bf16, atol=1e-3, rtol=1e-3)

    # Reference 2: full-f32 reference — relaxed tolerance for the bf16 cast.
    y_ref_f32 = jnp.einsum("nchw,oc->nohw", x, w.reshape(160, 960))
    assert jnp.allclose(y, y_ref_f32, atol=5e-2, rtol=5e-2)

    print("KERNEL_OK")
</pallas_src>

<mosaic_0001>
module attributes {stable_mosaic.version = 11 : i64} {
  func.func @_conv1x1_kernel(%arg0: i32, %arg1: i32, %arg2: memref<160x960xbf16, #tpu.memory_space<vmem>>, %arg3: memref<1x960x196xbf16, #tpu.memory_space<vmem>>, %arg4: memref<1x160x196xf32, #tpu.memory_space<vmem>>) attributes {dimension_semantics = [#tpu.dimension_semantics<parallel>, #tpu.dimension_semantics<parallel>], iteration_bounds = array<i64: 1, 1>, scalar_prefetch = 0 : i64, scratch_operands = 0 : i64, tpu.core_type = #tpu.core_type<tc>, window_params = [{pipeline_mode = #tpu.pipeline_mode<synchronous>, transform_indices = @transform_0, window_bounds = array<i64: 160, 960>}, {transform_indices = @transform_1, window_bounds = array<i64: 1, 960, 196>}, {transform_indices = @transform_2, window_bounds = array<i64: 1, 160, 196>}]} {
    %c0 = arith.constant 0 : index
    %c0_0 = arith.constant 0 : index
    %0 = vector.load %arg2[%c0, %c0_0] : memref<160x960xbf16, #tpu.memory_space<vmem>>, vector<160x960xbf16>
    %c0_1 = arith.constant 0 : index
    %c0_2 = arith.constant 0 : index
    %c0_3 = arith.constant 0 : index
    %1 = vector.load %arg3[%c0_1, %c0_2, %c0_3] : memref<1x960x196xbf16, #tpu.memory_space<vmem>>, vector<1x960x196xbf16>
    %2 = vector.shape_cast %1 : vector<1x960x196xbf16> to vector<960x196xbf16>
    %cst = arith.constant dense<0.000000e+00> : vector<160x196xf32>
    %3 = tpu.matmul %0, %2, %cst {dimension_numbers = #tpu.dot_dimension_numbers<[1], [0], [0], [1], [0, 0, 1, 1], [], []>} : vector<160x960xbf16>, vector<960x196xbf16>, vector<160x196xf32> -> vector<160x196xf32>
    %c0_4 = arith.constant 0 : index
    %c0_5 = arith.constant 0 : index
    %c0_6 = arith.constant 0 : index
    %4 = vector.load %arg4[%c0_4, %c0_5, %c0_6] : memref<1x160x196xf32, #tpu.memory_space<vmem>>, vector<1x160x196xf32>
    %5 = vector.shape_cast %4 : vector<1x160x196xf32> to vector<160x196xf32>
    %6 = vector.shape_cast %3 : vector<160x196xf32> to vector<1x160x196xf32>
    tpu.vector_store %arg4[%c0_4, %c0_5, %c0_6], %6 {strides = array<i32>} : memref<1x160x196xf32, #tpu.memory_space<vmem>>, vector<1x160x196xf32>,
    return
  }
  func.func @transform_0(%arg0: i32, %arg1: i32) -> (i32, i32) {
    %c0_i32 = arith.constant 0 : i32
    %c0_i32_0 = arith.constant 0 : i32
    %c0_i32_1 = arith.constant 0 : i32
    return %c0_i32, %c0_i32_0 : i32, i32
  }
  func.func @transform_1(%arg0: i32, %arg1: i32) -> (i32, i32, i32) {
    %c0_i32 = arith.constant 0 : i32
    %c0_i32_0 = arith.constant 0 : i32
    return %arg0, %c0_i32, %arg1 : i32, i32, i32
  }
  func.func @transform_2(%arg0: i32, %arg1: i32) -> (i32, i32, i32) {
    %c0_i32 = arith.constant 0 : i32
    %c0_i32_0 = arith.constant 0 : i32
    return %arg0, %c0_i32, %arg1 : i32, i32, i32
  }
}

</mosaic_0001>

<llo_original>
// kernel: tpu_custom_call.1
$region0: #{tpu_custom_call.1}
  #allocation0 [shape = 'u32[]', space=smem, size = 0x4, offset = 0x4, fixed_abs, tag = 'smem constant byte address 0x4 - core index']
  #allocation1 [shape = 'u32[72,128]{1,0:T(1,128)}', space=vmem, size = 0x9000, scoped, tag = 'internal scratch']
  %s0 = inlined_call_operand.vmem [shape: bf16[160,960], index: 0, kind: input, shape index: {}]
  %s1 = inlined_call_operand.vmem [shape: bf16[1,960,196], index: 1, kind: input, shape index: {}]
  %s2 = inlined_call_operand.hbm [shape: f32[1,160,196], index: 2, kind: output, shape index: {}]
  %s3 = sld [smem:[#allocation0]]
  $region18: #{tpu_custom_call.1} parent=0
    _
  %s5 = ssub.s32 1, %s3
  %s6 = scalar_select 0, %s5, %s3
  $region1: #{tpu_custom_call.1} parent=0
    #allocation2 [shape = 'u8[163840]{0}', space=vmem, size = 0x28000, scoped, tag = 'output window, operand 0, single buffered']
    #allocation3 [shape = 's32[1]{0}', space=sflag, size = 0x4, scoped, tag = 'scoped memory for tpu_custom_call.1']
    %7 = vsyncpa [#allocation3], 0
    // Predicated region
    $region2: #{tpu_custom_call.1} parent=1 // pred_check
      _
    $region3: #{tpu_custom_call.1} parent=1 // pred_check_branch
      %9 = sbr.rel (0) target = $region5
    $region4: #{tpu_custom_call.1} parent=1 // pred_region
      _
    $region5: #{tpu_custom_call.1} parent=1 // pred_fallthru
      _
    // Predicated region
    $region6: #{tpu_custom_call.1} parent=1 // pred_check
      _
    $region7: #{tpu_custom_call.1} parent=1 // pred_check_branch
      %11 = sbr.rel (0) target = $region9
    $region8: #{tpu_custom_call.1} parent=1 // pred_region
      _
    $region9: #{tpu_custom_call.1} parent=1 // pred_fallthru
      _
    %v13 = vld [vmem:[%s0] sm:$0xff]
    %v14 = vld [vmem:[%s0 + $0x8] sm:$0xff]
    %v15 = vld [vmem:[%s0 + $0x10] sm:$0xff]
    %v16 = vld [vmem:[%s0 + $0x18] sm:$0xff]
    %v17 = vld [vmem:[%s0 + $0x20] sm:$0xff]
    %v18 = vld [vmem:[%s0 + $0x28] sm:$0xff]
    %v19 = vld [vmem:[%s0 + $0x30] sm:$0xff]
    %v20 = vld [vmem:[%s0 + $0x38] sm:$0xff]
    %v21 = vld [vmem:[%s0 + $0x40] sm:$0xff]
    %v22 = vld [vmem:[%s0 + $0x48] sm:$0xff]
    %v23 = vld [vmem:[%s0 + $0x50] sm:$0xff]
    %v24 = vld [vmem:[%s0 + $0x58] sm:$0xff]
    %v25 = vld [vmem:[%s0 + $0x60] sm:$0xff]
    %v26 = vld [vmem:[%s0 + $0x68] sm:$0xff]
    %v27 = vld [vmem:[%s0 + $0x70] sm:$0xff]
    %v28 = vld [vmem:[%s0 + $0x78] sm:$0xff]
    %v29 = vld [vmem:[%s0 + $0x80] sm:$0xff]
    %v30 = vld [vmem:[%s0 + $0x88] sm:$0xff]
    %v31 = vld [vmem:[%s0 + $0x90] sm:$0xff]
    %v32 = vld [vmem:[%s0 + $0x98] sm:$0xff]
    %v33 = vld [vmem:[%s0 + $0xa0] sm:$0xff]
    %v34 = vld [vmem:[%s0 + $0xa8] sm:$0xff]
    %v35 = vld [vmem:[%s0 + $0xb0] sm:$0xff]
    %v36 = vld [vmem:[%s0 + $0xb8] sm:$0xff]
    %v37 = vld [vmem:[%s0 + $0xc0] sm:$0xff]
    %v38 = vld [vmem:[%s0 + $0xc8] sm:$0xff]
    %v39 = vld [vmem:[%s0 + $0xd0] sm:$0xff]
    %v40 = vld [vmem:[%s0 + $0xd8] sm:$0xff]
    %v41 = vld [vmem:[%s0 + $0xe0] sm:$0xff]
    %v42 = vld [vmem:[%s0 + $0xe8] sm:$0xff]
    %v43 = vld [vmem:[%s0 + $0xf0] sm:$0xff]
    %v44 = vld [vmem:[%s0 + $0xf8] sm:$0xff]
    %v45 = vld [vmem:[%s0 + $0x100] sm:$0xff]
    %v46 = vld [vmem:[%s0 + $0x108] sm:$0xff]
    %v47 = vld [vmem:[%s0 + $0x110] sm:$0xff]
    %v48 = vld [vmem:[%s0 + $0x118] sm:$0xff]
    %v49 = vld [vmem:[%s0 + $0x120] sm:$0xff]
    %v50 = vld [vmem:[%s0 + $0x128] sm:$0xff]
    %v51 = vld [vmem:[%s0 + $0x130] sm:$0xff]
    %v52 = vld [vmem:[%s0 + $0x138] sm:$0xff]
    %v53 = vld [vmem:[%s0 + $0x140] sm:$0xff]
    %v54 = vld [vmem:[%s0 + $0x148] sm:$0xff]
    %v55 = vld [vmem:[%s0 + $0x150] sm:$0xff]
    %v56 = vld [vmem:[%s0 + $0x158] sm:$0xff]
    %v57 = vld [vmem:[%s0 + $0x160] sm:$0xff]
    %v58 = vld [vmem:[%s0 + $0x168] sm:$0xff]
    %v59 = vld [vmem:[%s0 + $0x170] sm:$0xff]
    %v60 = vld [vmem:[%s0 + $0x178] sm:$0xff]
    %v61 = vld [vmem:[%s0 + $0x180] sm:$0xff]
    %v62 = vld [vmem:[%s0 + $0x188] sm:$0xff]
    %v63 = vld [vmem:[%s0 + $0x190] sm:$0xff]
    %v64 = vld [vmem:[%s0 + $0x198] sm:$0xff]
    %v65 = vld [vmem:[%s0 + $0x1a0] sm:$0xff]
    %v66 = vld [vmem:[%s0 + $0x1a8] sm:$0xff]
    %v67 = vld [vmem:[%s0 + $0x1b0] sm:$0xff]
    %v68 = vld [vmem:[%s0 + $0x1b8] sm:$0xff]
    %v69 = vld [vmem:[%s0 + $0x1c0] sm:$0xff]
    %v70 = vld [vmem:[%s0 + $0x1c8] sm:$0xff]
    %v71 = vld [vmem:[%s0 + $0x1d0] sm:$0xff]
    %v72 = vld [vmem:[%s0 + $0x1d8] sm:$0xff]
    %v73 = vld [vmem:[%s0 + $0x1e0] sm:$0xff]
    %v74 = vld [vmem:[%s0 + $0x1e8] sm:$0xff]
    %v75 = vld [vmem:[%s0 + $0x1f0] sm:$0xff]
    %v76 = vld [vmem:[%s0 + $0x1f8] sm:$0xff]
    %v77 = vld [vmem:[%s0 + $0x200] sm:$0xff]
    %v78 = vld [vmem:[%s0 + $0x208] sm:$0xff]
    %v79 = vld [vmem:[%s0 + $0x210] sm:$0xff]
    %v80 = vld [vmem:[%s0 + $0x218] sm:$0xff]
    %v81 = vld [vmem:[%s0 + $0x220] sm:$0xff]
    %v82 = vld [vmem:[%s0 + $0x228] sm:$0xff]
    %v83 = vld [vmem:[%s0 + $0x230] sm:$0xff]
    %v84 = vld [vmem:[%s0 + $0x238] sm:$0xff]
    %v85 = vld [vmem:[%s0 + $0x240] sm:$0xff]
    %v86 = vld [vmem:[%s0 + $0x248] sm:$0xff]
    %v87 = vld [vmem:[%s0 + $0x250] sm:$0xff]
    %v88 = vld [vmem:[%s0 + $0x258] sm:$0xff]
    %v89 = vld [vmem:[%s0 + $0x260] sm:$0xff]
    %v90 = vld [vmem:[%s0 + $0x268] sm:$0xff]
    %v91 = vld [vmem:[%s0 + $0x270] sm:$0xff]
    %v92 = vld [vmem:[%s0 + $0x278] sm:$0xff]
    %v93 = vld [vmem:[%s1] sm:$0xff]
    %v94 = vld [vmem:[%s1 + $0x8] sm:$0xff]
    %v95 = vld [vmem:[%s1 + $0x10] sm:$0xff]
    %v96 = vld [vmem:[%s1 + $0x18] sm:$0xff]
    %v97 = vld [vmem:[%s1 + $0x20] sm:$0xff]
    %v98 = vld [vmem:[%s1 + $0x28] sm:$0xff]
    %v99 = vld [vmem:[%s1 + $0x30] sm:$0xff]
    %v100 = vld [vmem:[%s1 + $0x38] sm:$0xff]
    %v101 = vld [vmem:[%s1 + $0x40] sm:$0xff]
    %v102 = vld [vmem:[%s1 + $0x48] sm:$0xff]
    %v103 = vld [vmem:[%s1 + $0x50] sm:$0xff]
    %v104 = vld [vmem:[%s1 + $0x58] sm:$0xff]
    %v105 = vld [vmem:[%s1 + $0x60] sm:$0xff]
    %v106 = vld [vmem:[%s1 + $0x68] sm:$0xff]
    %v107 = vld [vmem:[%s1 + $0x70] sm:$0xff]
    %v108 = vld [vmem:[%s1 + $0x78] sm:$0xff]
    %v109 = vld [vmem:[%s1 + $0x80] sm:$0xff]
    %v110 = vld [vmem:[%s1 + $0x88] sm:$0xff]
    %v111 = vld [vmem:[%s1 + $0x90] sm:$0xff]
    %v112 = vld [vmem:[%s1 + $0x98] sm:$0xff]
    %v113 = vld [vmem:[%s1 + $0xa0] sm:$0xff]
    %v114 = vld [vmem:[%s1 + $0xa8] sm:$0xff]
    %v115 = vld [vmem:[%s1 + $0xb0] sm:$0xff]
    %v116 = vld [vmem:[%s1 + $0xb8] sm:$0xff]
    %v117 = vld [vmem:[%s1 + $0xc0] sm:$0xff]
    %v118 = vld [vmem:[%s1 + $0xc8] sm:$0xff]
    %v119 = vld [vmem:[%s1 + $0xd0] sm:$0xff]
    %v120 = vld [vmem:[%s1 + $0xd8] sm:$0xff]
    %v121 = vld [vmem:[%s1 + $0xe0] sm:$0xff]
    %v122 = vld [vmem:[%s1 + $0xe8] sm:$0xff]
    %v123 = vld [vmem:[%s1 + $0xf0] sm:$0xff]
    %v124 = vld [vmem:[%s1 + $0xf8] sm:$0xff]
    %v125 = vld [vmem:[%s1 + $0x100] sm:$0xff]
    %v126 = vld [vmem:[%s1 + $0x108] sm:$0xff]
    %v127 = vld [vmem:[%s1 + $0x110] sm:$0xff]
    %v128 = vld [vmem:[%s1 + $0x118] sm:$0xff]
    %v129 = vld [vmem:[%s1 + $0x120] sm:$0xff]
    %v130 = vld [vmem:[%s1 + $0x128] sm:$0xff]
    %v131 = vld [vmem:[%s1 + $0x130] sm:$0xff]
    %v132 = vld [vmem:[%s1 + $0x138] sm:$0xff]
    %v133 = vld [vmem:[%s1 + $0x140] sm:$0xff]
    %v134 = vld [vmem:[%s1 + $0x148] sm:$0xff]
    %v135 = vld [vmem:[%s1 + $0x150] sm:$0xff]
    %v136 = vld [vmem:[%s1 + $0x158] sm:$0xff]
    %v137 = vld [vmem:[%s1 + $0x160] sm:$0xff]
    %v138 = vld [vmem:[%s1 + $0x168] sm:$0xff]
    %v139 = vld [vmem:[%s1 + $0x170] sm:$0xff]
    %v140 = vld [vmem:[%s1 + $0x178] sm:$0xff]
    %v141 = vld [vmem:[%s1 + $0x180] sm:$0xff]
    %v142 = vld [vmem:[%s1 + $0x188] sm:$0xff]
    %v143 = vld [vmem:[%s1 + $0x190] sm:$0xff]
    %v144 = vld [vmem:[%s1 + $0x198] sm:$0xff]
    %v145 = vld [vmem:[%s1 + $0x1a0] sm:$0xff]
    %v146 = vld [vmem:[%s1 + $0x1a8] sm:$0xff]
    %v147 = vld [vmem:[%s1 + $0x1b0] sm:$0xff]
    %v148 = vld [vmem:[%s1 + $0x1b8] sm:$0xff]
    %v149 = vld [vmem:[%s1 + $0x1c0] sm:$0xff]
    %v150 = vld [vmem:[%s1 + $0x1c8] sm:$0xff]
    %v151 = vld [vmem:[%s1 + $0x1d0] sm:$0xff]
    %v152 = vld [vmem:[%s1 + $0x1d8] sm:$0xff]
    %v153 = vld [vmem:[%s1 + $0x1e0] sm:$0xff]
    %v154 = vld [vmem:[%s1 + $0x1e8] sm:$0xff]
    %v155 = vld [vmem:[%s1 + $0x1f0] sm:$0xff]
    %v156 = vld [vmem:[%s1 + $0x1f8] sm:$0xff]
    %v157 = vld [vmem:[%s1 + $0x200] sm:$0xff]
    %v158 = vld [vmem:[%s1 + $0x208] sm:$0xff]
    %v159 = vld [vmem:[%s1 + $0x210] sm:$0xff]
    %v160 = vld [vmem:[%s1 + $0x218] sm:$0xff]
    %v161 = vld [vmem:[%s1 + $0x220] sm:$0xff]
    %v162 = vld [vmem:[%s1 + $0x228] sm:$0xff]
    %v163 = vld [vmem:[%s1 + $0x230] sm:$0xff]
    %v164 = vld [vmem:[%s1 + $0x238] sm:$0xff]
    %v165 = vld [vmem:[%s1 + $0x240] sm:$0xff]
    %v166 = vld [vmem:[%s1 + $0x248] sm:$0xff]
    %v167 = vld [vmem:[%s1 + $0x250] sm:$0xff]
    %v168 = vld [vmem:[%s1 + $0x258] sm:$0xff]
    %v169 = vld [vmem:[%s1 + $0x260] sm:$0xff]
    %v170 = vld [vmem:[%s1 + $0x268] sm:$0xff]
    %v171 = vld [vmem:[%s1 + $0x270] sm:$0xff]
    %v172 = vld [vmem:[%s1 + $0x278] sm:$0xff]
    %v173 = vld [vmem:[%s1 + $0x280] sm:$0xff]
    %v174 = vld [vmem:[%s1 + $0x288] sm:$0xff]
    %v175 = vld [vmem:[%s1 + $0x290] sm:$0xff]
    %v176 = vld [vmem:[%s1 + $0x298] sm:$0xff]
    %v177 = vld [vmem:[%s1 + $0x2a0] sm:$0xff]
    %v178 = vld [vmem:[%s1 + $0x2a8] sm:$0xff]
    %v179 = vld [vmem:[%s1 + $0x2b0] sm:$0xff]
    %v180 = vld [vmem:[%s1 + $0x2b8] sm:$0xff]
    %v181 = vld [vmem:[%s1 + $0x2c0] sm:$0xff]
    %v182 = vld [vmem:[%s1 + $0x2c8] sm:$0xff]
    %v183 = vld [vmem:[%s1 + $0x2d0] sm:$0xff]
    %v184 = vld [vmem:[%s1 + $0x2d8] sm:$0xff]
    %v185 = vld [vmem:[%s1 + $0x2e0] sm:$0xff]
    %v186 = vld [vmem:[%s1 + $0x2e8] sm:$0xff]
    %v187 = vld [vmem:[%s1 + $0x2f0] sm:$0xff]
    %v188 = vld [vmem:[%s1 + $0x2f8] sm:$0xff]
    %v189 = vld [vmem:[%s1 + $0x300] sm:$0xff]
    %v190 = vld [vmem:[%s1 + $0x308] sm:$0xff]
    %v191 = vld [vmem:[%s1 + $0x310] sm:$0xff]
    %v192 = vld [vmem:[%s1 + $0x318] sm:$0xff]
    %v193 = vld [vmem:[%s1 + $0x320] sm:$0xff]
    %v194 = vld [vmem:[%s1 + $0x328] sm:$0xff]
    %v195 = vld [vmem:[%s1 + $0x330] sm:$0xff]
    %v196 = vld [vmem:[%s1 + $0x338] sm:$0xff]
    %v197 = vld [vmem:[%s1 + $0x340] sm:$0xff]
    %v198 = vld [vmem:[%s1 + $0x348] sm:$0xff]
    %v199 = vld [vmem:[%s1 + $0x350] sm:$0xff]
    %v200 = vld [vmem:[%s1 + $0x358] sm:$0xff]
    %v201 = vld [vmem:[%s1 + $0x360] sm:$0xff]
    %v202 = vld [vmem:[%s1 + $0x368] sm:$0xff]
    %v203 = vld [vmem:[%s1 + $0x370] sm:$0xff]
    %v204 = vld [vmem:[%s1 + $0x378] sm:$0xff]
    %v205 = vld [vmem:[%s1 + $0x380] sm:$0xff]
    %v206 = vld [vmem:[%s1 + $0x388] sm:$0xff]
    %v207 = vld [vmem:[%s1 + $0x390] sm:$0xff]
    %v208 = vld [vmem:[%s1 + $0x398] sm:$0xff]
    %v209 = vld [vmem:[%s1 + $0x3a0] sm:$0xff]
    %v210 = vld [vmem:[%s1 + $0x3a8] sm:$0xff]
    %v211 = vld [vmem:[%s1 + $0x3b0] sm:$0xff]
    %v212 = vld [vmem:[%s1 + $0x3b8] sm:$0xff]
    %v293 = vunpack.c.l.b16 %v13
    %v294 = vunpack.c.h.b16 %v13
    %v295 = vunpack.c.l.b16 %v14
    %v296 = vunpack.c.h.b16 %v14
    %v297 = vunpack.c.l.b16 %v15
    %v298 = vunpack.c.h.b16 %v15
    %v299 = vunpack.c.l.b16 %v16
    %v300 = vunpack.c.h.b16 %v16
    %v301 = vunpack.c.l.b16 %v17
    %v302 = vunpack.c.h.b16 %v17
    %v303 = vunpack.c.l.b16 %v18
    %v304 = vunpack.c.h.b16 %v18
    %v305 = vunpack.c.l.b16 %v19
    %v306 = vunpack.c.h.b16 %v19
    %v307 = vunpack.c.l.b16 %v20
    %v308 = vunpack.c.h.b16 %v20
    %v309 = vunpack.c.l.b16 %v21
    %v310 = vunpack.c.h.b16 %v21
    %v311 = vunpack.c.l.b16 %v22
    %v312 = vunpack.c.h.b16 %v22
    %v313 = vunpack.c.l.b16 %v23
    %v314 = vunpack.c.h.b16 %v23
    %v315 = vunpack.c.l.b16 %v24
    %v316 = vunpack.c.h.b16 %v24
    %v317 = vunpack.c.l.b16 %v25
    %v318 = vunpack.c.h.b16 %v25
    %v319 = vunpack.c.l.b16 %v26
    %v320 = vunpack.c.h.b16 %v26
    %v321 = vunpack.c.l.b16 %v27
    %v322 = vunpack.c.h.b16 %v27
    %v323 = vunpack.c.l.b16 %v28
    %v324 = vunpack.c.h.b16 %v28
    %v325 = vunpack.c.l.b16 %v29
    %v326 = vunpack.c.h.b16 %v29
    %v327 = vunpack.c.l.b16 %v30
    %v328 = vunpack.c.h.b16 %v30
    %v329 = vunpack.c.l.b16 %v31
    %v330 = vunpack.c.h.b16 %v31
    %v331 = vunpack.c.l.b16 %v32
    %v332 = vunpack.c.h.b16 %v32
    %v333 = vunpack.c.l.b16 %v33
    %v334 = vunpack.c.h.b16 %v33
    %v335 = vunpack.c.l.b16 %v34
    %v336 = vunpack.c.h.b16 %v34
    %v337 = vunpack.c.l.b16 %v35
    %v338 = vunpack.c.h.b16 %v35
    %v339 = vunpack.c.l.b16 %v36
    %v340 = vunpack.c.h.b16 %v36
    %v341 = vunpack.c.l.b16 %v37
    %v342 = vunpack.c.h.b16 %v37
    %v343 = vunpack.c.l.b16 %v38
    %v344 = vunpack.c.h.b16 %v38
    %v345 = vunpack.c.l.b16 %v39
    %v346 = vunpack.c.h.b16 %v39
    %v347 = vunpack.c.l.b16 %v40
    %v348 = vunpack.c.h.b16 %v40
    %v349 = vunpack.c.l.b16 %v41
    %v350 = vunpack.c.h.b16 %v41
    %v351 = vunpack.c.l.b16 %v42
    %v352 = vunpack.c.h.b16 %v42
    %v353 = vunpack.c.l.b16 %v43
    %v354 = vunpack.c.h.b16 %v43
    %v355 = vunpack.c.l.b16 %v44
    %v356 = vunpack.c.h.b16 %v44
    %v357 = vunpack.c.l.b16 %v45
    %v358 = vunpack.c.h.b16 %v45
    %v359 = vunpack.c.l.b16 %v46
    %v360 = vunpack.c.h.b16 %v46
    %v361 = vunpack.c.l.b16 %v47
    %v362 = vunpack.c.h.b16 %v47
    %v363 = vunpack.c.l.b16 %v48
    %v364 = vunpack.c.h.b16 %v48
    %v365 = vunpack.c.l.b16 %v49
    %v366 = vunpack.c.h.b16 %v49
    %v367 = vunpack.c.l.b16 %v50
    %v368 = vunpack.c.h.b16 %v50
    %v369 = vunpack.c.l.b16 %v51
    %v370 = vunpack.c.h.b16 %v51
    %v371 = vunpack.c.l.b16 %v52
    %v372 = vunpack.c.h.b16 %v52
    %v373 = vunpack.c.l.b16 %v53
    %v374 = vunpack.c.h.b16 %v53
    %v375 = vunpack.c.l.b16 %v54
    %v376 = vunpack.c.h.b16 %v54
    %v377 = vunpack.c.l.b16 %v55
    %v378 = vunpack.c.h.b16 %v55
    %v379 = vunpack.c.l.b16 %v56
    %v380 = vunpack.c.h.b16 %v56
    %v381 = vunpack.c.l.b16 %v57
    %v382 = vunpack.c.h.b16 %v57
    %v383 = vunpack.c.l.b16 %v58
    %v384 = vunpack.c.h.b16 %v58
    %v385 = vunpack.c.l.b16 %v59
    %v386 = vunpack.c.h.b16 %v59
    %v387 = vunpack.c.l.b16 %v60
    %v388 = vunpack.c.h.b16 %v60
    %v389 = vunpack.c.l.b16 %v61
    %v390 = vunpack.c.h.b16 %v61
    %v391 = vunpack.c.l.b16 %v62
    %v392 = vunpack.c.h.b16 %v62
    %v393 = vunpack.c.l.b16 %v63
    %v394 = vunpack.c.h.b16 %v63
    %v395 = vunpack.c.l.b16 %v64
    %v396 = vunpack.c.h.b16 %v64
    %v397 = vunpack.c.l.b16 %v65
    %v398 = vunpack.c.h.b16 %v65
    %v399 = vunpack.c.l.b16 %v66
    %v400 = vunpack.c.h.b16 %v66
    %v401 = vunpack.c.l.b16 %v67
    %v402 = vunpack.c.h.b16 %v67
    %v403 = vunpack.c.l.b16 %v68
    %v404 = vunpack.c.h.b16 %v68
    %v405 = vunpack.c.l.b16 %v69
    %v406 = vunpack.c.h.b16 %v69
    %v407 = vunpack.c.l.b16 %v70
    %v408 = vunpack.c.h.b16 %v70
    %v409 = vunpack.c.l.b16 %v71
    %v410 = vunpack.c.h.b16 %v71
    %v411 = vunpack.c.l.b16 %v72
    %v412 = vunpack.c.h.b16 %v72
    %v413 = vunpack.c.l.b16 %v73
    %v414 = vunpack.c.h.b16 %v73
    %v415 = vunpack.c.l.b16 %v74
    %v416 = vunpack.c.h.b16 %v74
    %v417 = vunpack.c.l.b16 %v75
    %v418 = vunpack.c.h.b16 %v75
    %v419 = vunpack.c.l.b16 %v76
    %v420 = vunpack.c.h.b16 %v76
    %v421 = vunpack.c.l.b16 %v77
    %v422 = vunpack.c.h.b16 %v77
    %v423 = vunpack.c.l.b16 %v78
    %v424 = vunpack.c.h.b16 %v78
    %v425 = vunpack.c.l.b16 %v79
    %v426 = vunpack.c.h.b16 %v79
    %v427 = vunpack.c.l.b16 %v80
    %v428 = vunpack.c.h.b16 %v80
    %v429 = vunpack.c.l.b16 %v81
    %v430 = vunpack.c.h.b16 %v81
    %v431 = vunpack.c.l.b16 %v82
    %v432 = vunpack.c.h.b16 %v82
    %v433 = vunpack.c.l.b16 %v83
    %v434 = vunpack.c.h.b16 %v83
    %v435 = vunpack.c.l.b16 %v84
    %v436 = vunpack.c.h.b16 %v84
    %v437 = vunpack.c.l.b16 %v85
    %v438 = vunpack.c.h.b16 %v85
    %v439 = vunpack.c.l.b16 %v86
    %v440 = vunpack.c.h.b16 %v86
    %v441 = vunpack.c.l.b16 %v87
    %v442 = vunpack.c.h.b16 %v87
    %v443 = vunpack.c.l.b16 %v88
    %v444 = vunpack.c.h.b16 %v88
    %v445 = vunpack.c.l.b16 %v89
    %v446 = vunpack.c.h.b16 %v89
    %v447 = vunpack.c.l.b16 %v90
    %v448 = vunpack.c.h.b16 %v90
    %v449 = vunpack.c.l.b16 %v91
    %v450 = vunpack.c.h.b16 %v91
    %v451 = vunpack.c.l.b16 %v92
    %v452 = vunpack.c.h.b16 %v92
    %v453 = vpack.c.b16 %v301, %v293
    %v454 = vpack.c.b16 %v302, %v294
    %v455 = vpack.c.b16 %v303, %v295
    %v456 = vpack.c.b16 %v304, %v296
    %v457 = vpack.c.b16 %v305, %v297
    %v458 = vpack.c.b16 %v306, %v298
    %v459 = vpack.c.b16 %v307, %v299
    %v460 = vpack.c.b16 %v308, %v300
    %v461 = vpack.c.b16 %v317, %v309
    %v462 = vpack.c.b16 %v318, %v310
    %v463 = vpack.c.b16 %v319, %v311
    %v464 = vpack.c.b16 %v320, %v312
    %v465 = vpack.c.b16 %v321, %v313
    %v466 = vpack.c.b16 %v322, %v314
    %v467 = vpack.c.b16 %v323, %v315
    %v468 = vpack.c.b16 %v324, %v316
    %v469 = vpack.c.b16 %v333, %v325
    %v470 = vpack.c.b16 %v334, %v326
    %v471 = vpack.c.b16 %v335, %v327
    %v472 = vpack.c.b16 %v336, %v328
    %v473 = vpack.c.b16 %v337, %v329
    %v474 = vpack.c.b16 %v338, %v330
    %v475 = vpack.c.b16 %v339, %v331
    %v476 = vpack.c.b16 %v340, %v332
    %v477 = vpack.c.b16 %v349, %v341
    %v478 = vpack.c.b16 %v350, %v342
    %v479 = vpack.c.b16 %v351, %v343
    %v480 = vpack.c.b16 %v352, %v344
    %v481 = vpack.c.b16 %v353, %v345
    %v482 = vpack.c.b16 %v354, %v346
    %v483 = vpack.c.b16 %v355, %v347
    %v484 = vpack.c.b16 %v356, %v348
    %v485 = vpack.c.b16 %v365, %v357
    %v486 = vpack.c.b16 %v366, %v358
    %v487 = vpack.c.b16 %v367, %v359
    %v488 = vpack.c.b16 %v368, %v360
    %v489 = vpack.c.b16 %v369, %v361
    %v490 = vpack.c.b16 %v370, %v362
    %v491 = vpack.c.b16 %v371, %v363
    %v492 = vpack.c.b16 %v372, %v364
    %v493 = vpack.c.b16 %v381, %v373
    %v494 = vpack.c.b16 %v382, %v374
    %v495 = vpack.c.b16 %v383, %v375
    %v496 = vpack.c.b16 %v384, %v376
    %v497 = vpack.c.b16 %v385, %v377
    %v498 = vpack.c.b16 %v386, %v378
    %v499 = vpack.c.b16 %v387, %v379
    %v500 = vpack.c.b16 %v388, %v380
    %v501 = vpack.c.b16 %v397, %v389
    %v502 = vpack.c.b16 %v398, %v390
    %v503 = vpack.c.b16 %v399, %v391
    %v504 = vpack.c.b16 %v400, %v392
    %v505 = vpack.c.b16 %v401, %v393
    %v506 = vpack.c.b16 %v402, %v394
    %v507 = vpack.c.b16 %v403, %v395
    %v508 = vpack.c.b16 %v404, %v396
    %v509 = vpack.c.b16 %v413, %v405
    %v510 = vpack.c.b16 %v414, %v406
    %v511 = vpack.c.b16 %v415, %v407
    %v512 = vpack.c.b16 %v416, %v408
    %v513 = vpack.c.b16 %v417, %v409
    %v514 = vpack.c.b16 %v418, %v410
    %v515 = vpack.c.b16 %v419, %v411
    %v516 = vpack.c.b16 %v420, %v412
    %v517 = vpack.c.b16 %v429, %v421
    %v518 = vpack.c.b16 %v430, %v422
    %v519 = vpack.c.b16 %v431, %v423
    %v520 = vpack.c.b16 %v432, %v424
    %v521 = vpack.c.b16 %v433, %v425
    %v522 = vpack.c.b16 %v434, %v426
    %v523 = vpack.c.b16 %v435, %v427
    %v524 = vpack.c.b16 %v436, %v428
    %v525 = vpack.c.b16 %v445, %v437
    %v526 = vpack.c.b16 %v446, %v438
    %v527 = vpack.c.b16 %v447, %v439
    %v528 = vpack.c.b16 %v448, %v440
    %v529 = vpack.c.b16 %v449, %v441
    %v530 = vpack.c.b16 %v450, %v442
    %v531 = vpack.c.b16 %v451, %v443
    %v532 = vpack.c.b16 %v452, %v444
    %v723 = vunpack.c.l.b16 %v93
    %v724 = vunpack.c.h.b16 %v93
    %v725 = vunpack.c.l.b16 %v94
    %v726 = vunpack.c.h.b16 %v94
    %v727 = vunpack.c.l.b16 %v95
    %v728 = vunpack.c.h.b16 %v95
    %v729 = vunpack.c.l.b16 %v96
    %v730 = vunpack.c.h.b16 %v96
    %v731 = vunpack.c.l.b16 %v97
    %v732 = vunpack.c.h.b16 %v97
    %v733 = vunpack.c.l.b16 %v98
    %v734 = vunpack.c.h.b16 %v98
    %v735 = vunpack.c.l.b16 %v99
    %v736 = vunpack.c.h.b16 %v99
    %v737 = vunpack.c.l.b16 %v100
    %v738 = vunpack.c.h.b16 %v100
    %v739 = vunpack.c.l.b16 %v101
    %v740 = vunpack.c.h.b16 %v101
    %v741 = vunpack.c.l.b16 %v102
    %v742 = vunpack.c.h.b16 %v102
    %v743 = vunpack.c.l.b16 %v103
    %v744 = vunpack.c.h.b16 %v103
    %v745 = vunpack.c.l.b16 %v104
    %v746 = vunpack.c.h.b16 %v104
    %v747 = vunpack.c.l.b16 %v105
    %v748 = vunpack.c.h.b16 %v105
    %v749 = vunpack.c.l.b16 %v106
    %v750 = vunpack.c.h.b16 %v106
    %v751 = vunpack.c.l.b16 %v107
    %v752 = vunpack.c.h.b16 %v107
    %v753 = vunpack.c.l.b16 %v108
    %v754 = vunpack.c.h.b16 %v108
    %v755 = vunpack.c.l.b16 %v109
    %v756 = vunpack.c.h.b16 %v109
    %v757 = vunpack.c.l.b16 %v110
    %v758 = vunpack.c.h.b16 %v110
    %v759 = vunpack.c.l.b16 %v111
    %v760 = vunpack.c.h.b16 %v111
    %v761 = vunpack.c.l.b16 %v112
    %v762 = vunpack.c.h.b16 %v112
    %v763 = vunpack.c.l.b16 %v113
    %v764 = vunpack.c.h.b16 %v113
    %v765 = vunpack.c.l.b16 %v114
    %v766 = vunpack.c.h.b16 %v114
    %v767 = vunpack.c.l.b16 %v115
    %v768 = vunpack.c.h.b16 %v115
    %v769 = vunpack.c.l.b16 %v116
    %v770 = vunpack.c.h.b16 %v116
    %v771 = vunpack.c.l.b16 %v117
    %v772 = vunpack.c.h.b16 %v117
    %v773 = vunpack.c.l.b16 %v118
    %v774 = vunpack.c.h.b16 %v118
    %v775 = vunpack.c.l.b16 %v119
    %v776 = vunpack.c.h.b16 %v119
    %v777 = vunpack.c.l.b16 %v120
    %v778 = vunpack.c.h.b16 %v120
    %v779 = vunpack.c.l.b16 %v121
    %v780 = vunpack.c.h.b16 %v121
    %v781 = vunpack.c.l.b16 %v122
    %v782 = vunpack.c.h.b16 %v122
    %v783 = vunpack.c.l.b16 %v123
    %v784 = vunpack.c.h.b16 %v123
    %v785 = vunpack.c.l.b16 %v124
    %v786 = vunpack.c.h.b16 %v124
    %v787 = vunpack.c.l.b16 %v125
    %v788 = vunpack.c.h.b16 %v125
    %v789 = vunpack.c.l.b16 %v126
    %v790 = vunpack.c.h.b16 %v126
    %v791 = vunpack.c.l.b16 %v127
    %v792 = vunpack.c.h.b16 %v127
    %v793 = vunpack.c.l.b16 %v128
    %v794 = vunpack.c.h.b16 %v128
    %v795 = vunpack.c.l.b16 %v129
    %v796 = vunpack.c.h.b16 %v129
    %v797 = vunpack.c.l.b16 %v130
    %v798 = vunpack.c.h.b16 %v130
    %v799 = vunpack.c.l.b16 %v131
    %v800 = vunpack.c.h.b16 %v131
    %v801 = vunpack.c.l.b16 %v132
    %v802 = vunpack.c.h.b16 %v132
    %v803 = vunpack.c.l.b16 %v133
    %v804 = vunpack.c.h.b16 %v133
    %v805 = vunpack.c.l.b16 %v134
    %v806 = vunpack.c.h.b16 %v134
    %v807 = vunpack.c.l.b16 %v135
    %v808 = vunpack.c.h.b16 %v135
    %v809 = vunpack.c.l.b16 %v136
    %v810 = vunpack.c.h.b16 %v136
    %v811 = vunpack.c.l.b16 %v137
    %v812 = vunpack.c.h.b16 %v137
    %v813 = vunpack.c.l.b16 %v138
    %v814 = vunpack.c.h.b16 %v138
    %v815 = vunpack.c.l.b16 %v139
    %v816 = vunpack.c.h.b16 %v139
    %v817 = vunpack.c.l.b16 %v140
    %v818 = vunpack.c.h.b16 %v140
    %v819 = vunpack.c.l.b16 %v141
    %v820 = vunpack.c.h.b16 %v141
    %v821 = vunpack.c.l.b16 %v142
    %v822 = vunpack.c.h.b16 %v142
    %v823 = vunpack.c.l.b16 %v143
    %v824 = vunpack.c.h.b16 %v143
    %v825 = vunpack.c.l.b16 %v144
    %v826 = vunpack.c.h.b16 %v144
    %v827 = vunpack.c.l.b16 %v145
    %v828 = vunpack.c.h.b16 %v145
    %v829 = vunpack.c.l.b16 %v146
    %v830 = vunpack.c.h.b16 %v146
    %v831 = vunpack.c.l.b16 %v147
    %v832 = vunpack.c.h.b16 %v147
    %v833 = vunpack.c.l.b16 %v148
    %v834 = vunpack.c.h.b16 %v148
    %v835 = vunpack.c.l.b16 %v149
    %v836 = vunpack.c.h.b16 %v149
    %v837 = vunpack.c.l.b16 %v150
    %v838 = vunpack.c.h.b16 %v150
    %v839 = vunpack.c.l.b16 %v151
    %v840 = vunpack.c.h.b16 %v151
    %v841 = vunpack.c.l.b16 %v152
    %v842 = vunpack.c.h.b16 %v152
    %v843 = vunpack.c.l.b16 %v153
    %v844 = vunpack.c.h.b16 %v153
    %v845 = vunpack.c.l.b16 %v154
    %v846 = vunpack.c.h.b16 %v154
    %v847 = vunpack.c.l.b16 %v155
    %v848 = vunpack.c.h.b16 %v155
    %v849 = vunpack.c.l.b16 %v156
    %v850 = vunpack.c.h.b16 %v156
    %v851 = vunpack.c.l.b16 %v157
    %v852 = vunpack.c.h.b16 %v157
    %v853 = vunpack.c.l.b16 %v158
    %v854 = vunpack.c.h.b16 %v158
    %v855 = vunpack.c.l.b16 %v159
    %v856 = vunpack.c.h.b16 %v159
    %v857 = vunpack.c.l.b16 %v160
    %v858 = vunpack.c.h.b16 %v160
    %v859 = vunpack.c.l.b16 %v161
    %v860 = vunpack.c.h.b16 %v161
    %v861 = vunpack.c.l.b16 %v162
    %v862 = vunpack.c.h.b16 %v162
    %v863 = vunpack.c.l.b16 %v163
    %v864 = vunpack.c.h.b16 %v163
    %v865 = vunpack.c.l.b16 %v164
    %v866 = vunpack.c.h.b16 %v164
    %v867 = vunpack.c.l.b16 %v165
    %v868 = vunpack.c.h.b16 %v165
    %v869 = vunpack.c.l.b16 %v166
    %v870 = vunpack.c.h.b16 %v166
    %v871 = vunpack.c.l.b16 %v167
    %v872 = vunpack.c.h.b16 %v167
    %v873 = vunpack.c.l.b16 %v168
    %v874 = vunpack.c.h.b16 %v168
    %v875 = vunpack.c.l.b16 %v169
    %v876 = vunpack.c.h.b16 %v169
    %v877 = vunpack.c.l.b16 %v170
    %v878 = vunpack.c.h.b16 %v170
    %v879 = vunpack.c.l.b16 %v171
    %v880 = vunpack.c.h.b16 %v171
    %v881 = vunpack.c.l.b16 %v172
    %v882 = vunpack.c.h.b16 %v172
    %v883 = vunpack.c.l.b16 %v173
    %v884 = vunpack.c.h.b16 %v173
    %v885 = vunpack.c.l.b16 %v174
    %v886 = vunpack.c.h.b16 %v174
    %v887 = vunpack.c.l.b16 %v175
    %v888 = vunpack.c.h.b16 %v175
    %v889 = vunpack.c.l.b16 %v176
    %v890 = vunpack.c.h.b16 %v176
    %v891 = vunpack.c.l.b16 %v177
    %v892 = vunpack.c.h.b16 %v177
    %v893 = vunpack.c.l.b16 %v178
    %v894 = vunpack.c.h.b16 %v178
    %v895 = vunpack.c.l.b16 %v179
    %v896 = vunpack.c.h.b16 %v179
    %v897 = vunpack.c.l.b16 %v180
    %v898 = vunpack.c.h.b16 %v180
    %v899 = vunpack.c.l.b16 %v181
    %v900 = vunpack.c.h.b16 %v181
    %v901 = vunpack.c.l.b16 %v182
    %v902 = vunpack.c.h.b16 %v182
    %v903 = vunpack.c.l.b16 %v183
    %v904 = vunpack.c.h.b16 %v183
    %v905 = vunpack.c.l.b16 %v184
    %v906 = vunpack.c.h.b16 %v184
    %v907 = vunpack.c.l.b16 %v185
    %v908 = vunpack.c.h.b16 %v185
    %v909 = vunpack.c.l.b16 %v186
    %v910 = vunpack.c.h.b16 %v186
    %v911 = vunpack.c.l.b16 %v187
    %v912 = vunpack.c.h.b16 %v187
    %v913 = vunpack.c.l.b16 %v188
    %v914 = vunpack.c.h.b16 %v188
    %v915 = vunpack.c.l.b16 %v189
    %v916 = vunpack.c.h.b16 %v189
    %v917 = vunpack.c.l.b16 %v190
    %v918 = vunpack.c.h.b16 %v190
    %v919 = vunpack.c.l.b16 %v191
    %v920 = vunpack.c.h.b16 %v191
    %v921 = vunpack.c.l.b16 %v192
    %v922 = vunpack.c.h.b16 %v192
    %v923 = vunpack.c.l.b16 %v193
    %v924 = vunpack.c.h.b16 %v193
    %v925 = vunpack.c.l.b16 %v194
    %v926 = vunpack.c.h.b16 %v194
    %v927 = vunpack.c.l.b16 %v195
    %v928 = vunpack.c.h.b16 %v195
    %v929 = vunpack.c.l.b16 %v196
    %v930 = vunpack.c.h.b16 %v196
    %v931 = vunpack.c.l.b16 %v197
    %v932 = vunpack.c.h.b16 %v197
    %v933 = vunpack.c.l.b16 %v198
    %v934 = vunpack.c.h.b16 %v198
    %v935 = vunpack.c.l.b16 %v199
    %v936 = vunpack.c.h.b16 %v199
    %v937 = vunpack.c.l.b16 %v200
    %v938 = vunpack.c.h.b16 %v200
    %v939 = vunpack.c.l.b16 %v201
    %v940 = vunpack.c.h.b16 %v201
    %v941 = vunpack.c.l.b16 %v202
    %v942 = vunpack.c.h.b16 %v202
    %v943 = vunpack.c.l.b16 %v203
    %v944 = vunpack.c.h.b16 %v203
    %v945 = vunpack.c.l.b16 %v204
    %v946 = vunpack.c.h.b16 %v204
    %v947 = vunpack.c.l.b16 %v205
    %v948 = vunpack.c.h.b16 %v205
    %v949 = vunpack.c.l.b16 %v206
    %v950 = vunpack.c.h.b16 %v206
    %v951 = vunpack.c.l.b16 %v207
    %v952 = vunpack.c.h.b16 %v207
    %v953 = vunpack.c.l.b16 %v208
    %v954 = vunpack.c.h.b16 %v208
    %v955 = vunpack.c.l.b16 %v209
    %v956 = vunpack.c.h.b16 %v209
    %v957 = vunpack.c.l.b16 %v210
    %v958 = vunpack.c.h.b16 %v210
    %v959 = vunpack.c.l.b16 %v211
    %v960 = vunpack.c.h.b16 %v211
    %v961 = vunpack.c.l.b16 %v212
    %v962 = vunpack.c.h.b16 %v212
    %v963 = vpack.c.b16 %v725, %v723
    %v964 = vpack.c.b16 %v726, %v724
    %v965 = vpack.c.b16 %v729, %v727
    %v966 = vpack.c.b16 %v730, %v728
    %v967 = vpack.c.b16 %v733, %v731
    %v968 = vpack.c.b16 %v734, %v732
    %v969 = vpack.c.b16 %v737, %v735
    %v970 = vpack.c.b16 %v738, %v736
    %v971 = vpack.c.b16 %v741, %v739
    %v972 = vpack.c.b16 %v742, %v740
    %v973 = vpack.c.b16 %v745, %v743
    %v974 = vpack.c.b16 %v746, %v744
    %v975 = vpack.c.b16 %v749, %v747
    %v976 = vpack.c.b16 %v750, %v748
    %v977 = vpack.c.b16 %v753, %v751
    %v978 = vpack.c.b16 %v754, %v752
    %v979 = vpack.c.b16 %v757, %v755
    %v980 = vpack.c.b16 %v758, %v756
    %v981 = vpack.c.b16 %v761, %v759
    %v982 = vpack.c.b16 %v762, %v760
    %v983 = vpack.c.b16 %v765, %v763
    %v984 = vpack.c.b16 %v766, %v764
    %v985 = vpack.c.b16 %v769, %v767
    %v986 = vpack.c.b16 %v770, %v768
    %v987 = vpack.c.b16 %v773, %v771
    %v988 = vpack.c.b16 %v774, %v772
    %v989 = vpack.c.b16 %v777, %v775
    %v990 = vpack.c.b16 %v778, %v776
    %v991 = vpack.c.b16 %v781, %v779
    %v992 = vpack.c.b16 %v782, %v780
    %v993 = vpack.c.b16 %v785, %v783
    %v994 = vpack.c.b16 %v786, %v784
    %v995 = vpack.c.b16 %v789, %v787
    %v996 = vpack.c.b16 %v790, %v788
    %v997 = vpack.c.b16 %v793, %v791
    %v998 = vpack.c.b16 %v794, %v792
    %v999 = vpack.c.b16 %v797, %v795
    %v1000 = vpack.c.b16 %v798, %v796
    %v1001 = vpack.c.b16 %v801, %v799
    %v1002 = vpack.c.b16 %v802, %v800
    %v1003 = vpack.c.b16 %v805, %v803
    %v1004 = vpack.c.b16 %v806, %v804
    %v1005 = vpack.c.b16 %v809, %v807
    %v1006 = vpack.c.b16 %v810, %v808
    %v1007 = vpack.c.b16 %v813, %v811
    %v1008 = vpack.c.b16 %v814, %v812
    %v1009 = vpack.c.b16 %v817, %v815
    %v1010 = vpack.c.b16 %v818, %v816
    %v1011 = vpack.c.b16 %v821, %v819
    %v1012 = vpack.c.b16 %v822, %v820
    %v1013 = vpack.c.b16 %v825, %v823
    %v1014 = vpack.c.b16 %v826, %v824
    %v1015 = vpack.c.b16 %v829, %v827
    %v1016 = vpack.c.b16 %v830, %v828
    %v1017 = vpack.c.b16 %v833, %v831
    %v1018 = vpack.c.b16 %v834, %v832
    %v1019 = vpack.c.b16 %v837, %v835
    %v1020 = vpack.c.b16 %v838, %v836
    %v1021 = vpack.c.b16 %v841, %v839
    %v1022 = vpack.c.b16 %v842, %v840
    %v1023 = vpack.c.b16 %v845, %v843
    %v1024 = vpack.c.b16 %v846, %v844
    %v1025 = vpack.c.b16 %v849, %v847
    %v1026 = vpack.c.b16 %v850, %v848
    %v1027 = vpack.c.b16 %v853, %v851
    %v1028 = vpack.c.b16 %v854, %v852
    %v1029 = vpack.c.b16 %v857, %v855
    %v1030 = vpack.c.b16 %v858, %v856
    %v1031 = vpack.c.b16 %v861, %v859
    %v1032 = vpack.c.b16 %v862, %v860
    %v1033 = vpack.c.b16 %v865, %v863
    %v1034 = vpack.c.b16 %v866, %v864
    %v1035 = vpack.c.b16 %v869, %v867
    %v1036 = vpack.c.b16 %v870, %v868
    %v1037 = vpack.c.b16 %v873, %v871
    %v1038 = vpack.c.b16 %v874, %v872
    %v1039 = vpack.c.b16 %v877, %v875
    %v1040 = vpack.c.b16 %v878, %v876
    %v1041 = vpack.c.b16 %v881, %v879
    %v1042 = vpack.c.b16 %v882, %v880
    %v1043 = vpack.c.b16 %v885, %v883
    %v1044 = vpack.c.b16 %v886, %v884
    %v1045 = vpack.c.b16 %v889, %v887
    %v1046 = vpack.c.b16 %v890, %v888
    %v1047 = vpack.c.b16 %v893, %v891
    %v1048 = vpack.c.b16 %v894, %v892
    %v1049 = vpack.c.b16 %v897, %v895
    %v1050 = vpack.c.b16 %v898, %v896
    %v1051 = vpack.c.b16 %v901, %v899
    %v1052 = vpack.c.b16 %v902, %v900
    %v1053 = vpack.c.b16 %v905, %v903
    %v1054 = vpack.c.b16 %v906, %v904
    %v1055 = vpack.c.b16 %v909, %v907
    %v1056 = vpack.c.b16 %v910, %v908
    %v1057 = vpack.c.b16 %v913, %v911
    %v1058 = vpack.c.b16 %v914, %v912
    %v1059 = vpack.c.b16 %v917, %v915
    %v1060 = vpack.c.b16 %v918, %v916
    %v1061 = vpack.c.b16 %v921, %v919
    %v1062 = vpack.c.b16 %v922, %v920
    %v1063 = vpack.c.b16 %v925, %v923
    %v1064 = vpack.c.b16 %v926, %v924
    %v1065 = vpack.c.b16 %v929, %v927
    %v1066 = vpack.c.b16 %v930, %v928
    %v1067 = vpack.c.b16 %v933, %v931
    %v1068 = vpack.c.b16 %v934, %v932
    %v1069 = vpack.c.b16 %v937, %v935
    %v1070 = vpack.c.b16 %v938, %v936
    %v1071 = vpack.c.b16 %v941, %v939
    %v1072 = vpack.c.b16 %v942, %v940
    %v1073 = vpack.c.b16 %v945, %v943
    %v1074 = vpack.c.b16 %v946, %v944
    %v1075 = vpack.c.b16 %v949, %v947
    %v1076 = vpack.c.b16 %v950, %v948
    %v1077 = vpack.c.b16 %v953, %v951
    %v1078 = vpack.c.b16 %v954, %v952
    %v1079 = vpack.c.b16 %v957, %v955
    %v1080 = vpack.c.b16 %v958, %v956
    %v1081 = vpack.c.b16 %v961, %v959
    %v1082 = vpack.c.b16 %v962, %v960
    %vm1203 = vcmask 523264
    %v1205 = vsel %vm1203, %v460, 0
    %v1208 = vsel %vm1203, %v468, 0
    %v1211 = vsel %vm1203, %v476, 0
    %v1214 = vsel %vm1203, %v484, 0
    %v1217 = vsel %vm1203, %v492, 0
    %v1220 = vsel %vm1203, %v500, 0
    %v1223 = vsel %vm1203, %v508, 0
    %v1226 = vsel %vm1203, %v516, 0
    %v1229 = vsel %vm1203, %v524, 0
    %v1232 = vsel %vm1203, %v532, 0
    %1234 = vmatpush.bf16.msra.mxu0 %v977
    %1235 = vmatpush.bf16.msra.mxu0 %v975
    %1236 = vmatpush.bf16.msra.mxu0 %v973
    %1237 = vmatpush.bf16.msra.mxu0 %v971
    %1238 = vmatpush.bf16.msra.mxu0 %v969
    %1239 = vmatpush.bf16.msra.mxu0 %v967
    %1240 = vmatpush.bf16.msra.mxu0 %v965
    %1241 = vmatpush.bf16.msra.mxu0 %v963
    %1242 = vmatmul.bf16.gmra.mxu0 %v453
    %v1243 = vpop.f32.mrf.mxu0
    %v1244 = vadd.f32 0.0, %v1243
    %v1245 = vpop.f32.mrf.mxu0
    %v1246 = vadd.f32 0.0, %v1245
    %1247 = vmatmul.bf16.gmra.mxu0 %v461
    %v1248 = vpop.f32.mrf.mxu0
    %v1249 = vadd.f32 0.0, %v1248
    %v1250 = vpop.f32.mrf.mxu0
    %v1251 = vadd.f32 0.0, %v1250
    %1252 = vmatmul.bf16.gmra.mxu0 %v469
    %v1253 = vpop.f32.mrf.mxu0
    %v1254 = vadd.f32 0.0, %v1253
    %v1255 = vpop.f32.mrf.mxu0
    %v1256 = vadd.f32 0.0, %v1255
    %1257 = vmatmul.bf16.gmra.mxu0 %v477
    %v1258 = vpop.f32.mrf.mxu0
    %v1259 = vadd.f32 0.0, %v1258
    %v1260 = vpop.f32.mrf.mxu0
    %v1261 = vadd.f32 0.0, %v1260
    %1262 = vmatmul.bf16.gmra.mxu0 %v485
    %v1263 = vpop.f32.mrf.mxu0
    %v1264 = vadd.f32 0.0, %v1263
    %v1265 = vpop.f32.mrf.mxu0
    %v1266 = vadd.f32 0.0, %v1265
    %1267 = vmatmul.bf16.gmra.mxu0 %v493
    %v1268 = vpop.f32.mrf.mxu0
    %v1269 = vadd.f32 0.0, %v1268
    %v1270 = vpop.f32.mrf.mxu0
    %v1271 = vadd.f32 0.0, %v1270
    %1272 = vmatmul.bf16.gmra.mxu0 %v501
    %v1273 = vpop.f32.mrf.mxu0
    %v1274 = vadd.f32 0.0, %v1273
    %v1275 = vpop.f32.mrf.mxu0
    %v1276 = vadd.f32 0.0, %v1275
    %1277 = vmatmul.bf16.gmra.mxu0 %v509
    %v1278 = vpop.f32.mrf.mxu0
    %v1279 = vadd.f32 0.0, %v1278
    %v1280 = vpop.f32.mrf.mxu0
    %v1281 = vadd.f32 0.0, %v1280
    %1282 = vmatmul.bf16.gmra.mxu0 %v517
    %v1283 = vpop.f32.mrf.mxu0
    %v1284 = vadd.f32 0.0, %v1283
    %v1285 = vpop.f32.mrf.mxu0
    %v1286 = vadd.f32 0.0, %v1285
    %1287 = vmatmul.bf16.gmra.mxu0 %v525
    %v1288 = vpop.f32.mrf.mxu0
    %v1289 = vadd.f32 0.0, %v1288
    %v1290 = vpop.f32.mrf.mxu0
    %v1291 = vadd.f32 0.0, %v1290
    %1292 = vdwg.mxu0
    %1293 = vmatpush.bf16.msra.mxu0 %v993
    %1294 = vmatpush.bf16.msra.mxu0 %v991
    %1295 = vmatpush.bf16.msra.mxu0 %v989
    %1296 = vmatpush.bf16.msra.mxu0 %v987
    %1297 = vmatpush.bf16.msra.mxu0 %v985
    %1298 = vmatpush.bf16.msra.mxu0 %v983
    %1299 = vmatpush.bf16.msra.mxu0 %v981
    %1300 = vmatpush.bf16.msra.mxu0 %v979
    %1301 = vmatmul.bf16.gmra.mxu0 %v454
    %v1302 = vpop.f32.mrf.mxu0
    %v1303 = vadd.f32 %v1244, %v1302
    %v1304 = vpop.f32.mrf.mxu0
    %v1305 = vadd.f32 %v1246, %v1304
    %1306 = vmatmul.bf16.gmra.mxu0 %v462
    %v1307 = vpop.f32.mrf.mxu0
    %v1308 = vadd.f32 %v1249, %v1307
    %v1309 = vpop.f32.mrf.mxu0
    %v1310 = vadd.f32 %v1251, %v1309
    %1311 = vmatmul.bf16.gmra.mxu0 %v470
    %v1312 = vpop.f32.mrf.mxu0
    %v1313 = vadd.f32 %v1254, %v1312
    %v1314 = vpop.f32.mrf.mxu0
    %v1315 = vadd.f32 %v1256, %v1314
    %1316 = vmatmul.bf16.gmra.mxu0 %v478
    %v1317 = vpop.f32.mrf.mxu0
    %v1318 = vadd.f32 %v1259, %v1317
    %v1319 = vpop.f32.mrf.mxu0
    %v1320 = vadd.f32 %v1261, %v1319
    %1321 = vmatmul.bf16.gmra.mxu0 %v486
    %v1322 = vpop.f32.mrf.mxu0
    %v1323 = vadd.f32 %v1264, %v1322
    %v1324 = vpop.f32.mrf.mxu0
    %v1325 = vadd.f32 %v1266, %v1324
    %1326 = vmatmul.bf16.gmra.mxu0 %v494
    %v1327 = vpop.f32.mrf.mxu0
    %v1328 = vadd.f32 %v1269, %v1327
    %v1329 = vpop.f32.mrf.mxu0
    %v1330 = vadd.f32 %v1271, %v1329
    %1331 = vmatmul.bf16.gmra.mxu0 %v502
    %v1332 = vpop.f32.mrf.mxu0
    %v1333 = vadd.f32 %v1274, %v1332
    %v1334 = vpop.f32.mrf.mxu0
    %v1335 = vadd.f32 %v1276, %v1334
    %1336 = vmatmul.bf16.gmra.mxu0 %v510
    %v1337 = vpop.f32.mrf.mxu0
    %v1338 = vadd.f32 %v1279, %v1337
    %v1339 = vpop.f32.mrf.mxu0
    %v1340 = vadd.f32 %v1281, %v1339
    %1341 = vmatmul.bf16.gmra.mxu0 %v518
    %v1342 = vpop.f32.mrf.mxu0
    %v1343 = vadd.f32 %v1284, %v1342
    %v1344 = vpop.f32.mrf.mxu0
    %v1345 = vadd.f32 %v1286, %v1344
    %1346 = vmatmul.bf16.gmra.mxu0 %v526
    %v1347 = vpop.f32.mrf.mxu0
    %v1348 = vadd.f32 %v1289, %v1347
    %v1349 = vpop.f32.mrf.mxu0
    %v1350 = vadd.f32 %v1291, %v1349
    %1351 = vdwg.mxu0
    %1352 = vmatpush.bf16.msra.mxu0 %v1009
    %1353 = vmatpush.bf16.msra.mxu0 %v1007
    %1354 = vmatpush.bf16.msra.mxu0 %v1005
    %1355 = vmatpush.bf16.msra.mxu0 %v1003
    %1356 = vmatpush.bf16.msra.mxu0 %v1001
    %1357 = vmatpush.bf16.msra.mxu0 %v999
    %1358 = vmatpush.bf16.msra.mxu0 %v997
    %1359 = vmatpush.bf16.msra.mxu0 %v995
    %1360 = vmatmul.bf16.gmra.mxu0 %v455
    %v1361 = vpop.f32.mrf.mxu0
    %v1362 = vadd.f32 %v1303, %v1361
    %v1363 = vpop.f32.mrf.mxu0
    %v1364 = vadd.f32 %v1305, %v1363
    %1365 = vmatmul.bf16.gmra.mxu0 %v463
    %v1366 = vpop.f32.mrf.mxu0
    %v1367 = vadd.f32 %v1308, %v1366
    %v1368 = vpop.f32.mrf.mxu0
    %v1369 = vadd.f32 %v1310, %v1368
    %1370 = vmatmul.bf16.gmra.mxu0 %v471
    %v1371 = vpop.f32.mrf.mxu0
    %v1372 = vadd.f32 %v1313, %v1371
    %v1373 = vpop.f32.mrf.mxu0
    %v1374 = vadd.f32 %v1315, %v1373
    %1375 = vmatmul.bf16.gmra.mxu0 %v479
    %v1376 = vpop.f32.mrf.mxu0
    %v1377 = vadd.f32 %v1318, %v1376
    %v1378 = vpop.f32.mrf.mxu0
    %v1379 = vadd.f32 %v1320, %v1378
    %1380 = vmatmul.bf16.gmra.mxu0 %v487
    %v1381 = vpop.f32.mrf.mxu0
    %v1382 = vadd.f32 %v1323, %v1381
    %v1383 = vpop.f32.mrf.mxu0
    %v1384 = vadd.f32 %v1325, %v1383
    %1385 = vmatmul.bf16.gmra.mxu0 %v495
    %v1386 = vpop.f32.mrf.mxu0
    %v1387 = vadd.f32 %v1328, %v1386
    %v1388 = vpop.f32.mrf.mxu0
    %v1389 = vadd.f32 %v1330, %v1388
    %1390 = vmatmul.bf16.gmra.mxu0 %v503
    %v1391 = vpop.f32.mrf.mxu0
    %v1392 = vadd.f32 %v1333, %v1391
    %v1393 = vpop.f32.mrf.mxu0
    %v1394 = vadd.f32 %v1335, %v1393
    %1395 = vmatmul.bf16.gmra.mxu0 %v511
    %v1396 = vpop.f32.mrf.mxu0
    %v1397 = vadd.f32 %v1338, %v1396
    %v1398 = vpop.f32.mrf.mxu0
    %v1399 = vadd.f32 %v1340, %v1398
    %1400 = vmatmul.bf16.gmra.mxu0 %v519
    %v1401 = vpop.f32.mrf.mxu0
    %v1402 = vadd.f32 %v1343, %v1401
    %v1403 = vpop.f32.mrf.mxu0
    %v1404 = vadd.f32 %v1345, %v1403
    %1405 = vmatmul.bf16.gmra.mxu0 %v527
    %v1406 = vpop.f32.mrf.mxu0
    %v1407 = vadd.f32 %v1348, %v1406
    %v1408 = vpop.f32.mrf.mxu0
    %v1409 = vadd.f32 %v1350, %v1408
    %1410 = vdwg.mxu0
    %1411 = vmatpush.bf16.msra.mxu0 %v1025
    %1412 = vmatpush.bf16.msra.mxu0 %v1023
    %1413 = vmatpush.bf16.msra.mxu0 %v1021
    %1414 = vmatpush.bf16.msra.mxu0 %v1019
    %1415 = vmatpush.bf16.msra.mxu0 %v1017
    %1416 = vmatpush.bf16.msra.mxu0 %v1015
    %1417 = vmatpush.bf16.msra.mxu0 %v1013
    %1418 = vmatpush.bf16.msra.mxu0 %v1011
    %1419 = vmatmul.bf16.gmra.mxu0 %v456
    %v1420 = vpop.f32.mrf.mxu0
    %v1421 = vadd.f32 %v1362, %v1420
    %v1422 = vpop.f32.mrf.mxu0
    %v1423 = vadd.f32 %v1364, %v1422
    %1424 = vmatmul.bf16.gmra.mxu0 %v464
    %v1425 = vpop.f32.mrf.mxu0
    %v1426 = vadd.f32 %v1367, %v1425
    %v1427 = vpop.f32.mrf.mxu0
    %v1428 = vadd.f32 %v1369, %v1427
    %1429 = vmatmul.bf16.gmra.mxu0 %v472
    %v1430 = vpop.f32.mrf.mxu0
    %v1431 = vadd.f32 %v1372, %v1430
    %v1432 = vpop.f32.mrf.mxu0
    %v1433 = vadd.f32 %v1374, %v1432
    %1434 = vmatmul.bf16.gmra.mxu0 %v480
    %v1435 = vpop.f32.mrf.mxu0
    %v1436 = vadd.f32 %v1377, %v1435
    %v1437 = vpop.f32.mrf.mxu0
    %v1438 = vadd.f32 %v1379, %v1437
    %1439 = vmatmul.bf16.gmra.mxu0 %v488
    %v1440 = vpop.f32.mrf.mxu0
    %v1441 = vadd.f32 %v1382, %v1440
    %v1442 = vpop.f32.mrf.mxu0
    %v1443 = vadd.f32 %v1384, %v1442
    %1444 = vmatmul.bf16.gmra.mxu0 %v496
    %v1445 = vpop.f32.mrf.mxu0
    %v1446 = vadd.f32 %v1387, %v1445
    %v1447 = vpop.f32.mrf.mxu0
    %v1448 = vadd.f32 %v1389, %v1447
    %1449 = vmatmul.bf16.gmra.mxu0 %v504
    %v1450 = vpop.f32.mrf.mxu0
    %v1451 = vadd.f32 %v1392, %v1450
    %v1452 = vpop.f32.mrf.mxu0
    %v1453 = vadd.f32 %v1394, %v1452
    %1454 = vmatmul.bf16.gmra.mxu0 %v512
    %v1455 = vpop.f32.mrf.mxu0
    %v1456 = vadd.f32 %v1397, %v1455
    %v1457 = vpop.f32.mrf.mxu0
    %v1458 = vadd.f32 %v1399, %v1457
    %1459 = vmatmul.bf16.gmra.mxu0 %v520
    %v1460 = vpop.f32.mrf.mxu0
    %v1461 = vadd.f32 %v1402, %v1460
    %v1462 = vpop.f32.mrf.mxu0
    %v1463 = vadd.f32 %v1404, %v1462
    %1464 = vmatmul.bf16.gmra.mxu0 %v528
    %v1465 = vpop.f32.mrf.mxu0
    %v1466 = vadd.f32 %v1407, %v1465
    %v1467 = vpop.f32.mrf.mxu0
    %v1468 = vadd.f32 %v1409, %v1467
    %1469 = vdwg.mxu0
    %1470 = vmatpush.bf16.msra.mxu0 %v1041
    %1471 = vmatpush.bf16.msra.mxu0 %v1039
    %1472 = vmatpush.bf16.msra.mxu0 %v1037
    %1473 = vmatpush.bf16.msra.mxu0 %v1035
    %1474 = vmatpush.bf16.msra.mxu0 %v1033
    %1475 = vmatpush.bf16.msra.mxu0 %v1031
    %1476 = vmatpush.bf16.msra.mxu0 %v1029
    %1477 = vmatpush.bf16.msra.mxu0 %v1027
    %1478 = vmatmul.bf16.gmra.mxu0 %v457
    %v1479 = vpop.f32.mrf.mxu0
    %v1480 = vadd.f32 %v1421, %v1479
    %v1481 = vpop.f32.mrf.mxu0
    %v1482 = vadd.f32 %v1423, %v1481
    %1483 = vmatmul.bf16.gmra.mxu0 %v465
    %v1484 = vpop.f32.mrf.mxu0
    %v1485 = vadd.f32 %v1426, %v1484
    %v1486 = vpop.f32.mrf.mxu0
    %v1487 = vadd.f32 %v1428, %v1486
    %1488 = vmatmul.bf16.gmra.mxu0 %v473
    %v1489 = vpop.f32.mrf.mxu0
    %v1490 = vadd.f32 %v1431, %v1489
    %v1491 = vpop.f32.mrf.mxu0
    %v1492 = vadd.f32 %v1433, %v1491
    %1493 = vmatmul.bf16.gmra.mxu0 %v481
    %v1494 = vpop.f32.mrf.mxu0
    %v1495 = vadd.f32 %v1436, %v1494
    %v1496 = vpop.f32.mrf.mxu0
    %v1497 = vadd.f32 %v1438, %v1496
    %1498 = vmatmul.bf16.gmra.mxu0 %v489
    %v1499 = vpop.f32.mrf.mxu0
    %v1500 = vadd.f32 %v1441, %v1499
    %v1501 = vpop.f32.mrf.mxu0
    %v1502 = vadd.f32 %v1443, %v1501
    %1503 = vmatmul.bf16.gmra.mxu0 %v497
    %v1504 = vpop.f32.mrf.mxu0
    %v1505 = vadd.f32 %v1446, %v1504
    %v1506 = vpop.f32.mrf.mxu0
    %v1507 = vadd.f32 %v1448, %v1506
    %1508 = vmatmul.bf16.gmra.mxu0 %v505
    %v1509 = vpop.f32.mrf.mxu0
    %v1510 = vadd.f32 %v1451, %v1509
    %v1511 = vpop.f32.mrf.mxu0
    %v1512 = vadd.f32 %v1453, %v1511
    %1513 = vmatmul.bf16.gmra.mxu0 %v513
    %v1514 = vpop.f32.mrf.mxu0
    %v1515 = vadd.f32 %v1456, %v1514
    %v1516 = vpop.f32.mrf.mxu0
    %v1517 = vadd.f32 %v1458, %v1516
    %1518 = vmatmul.bf16.gmra.mxu0 %v521
    %v1519 = vpop.f32.mrf.mxu0
    %v1520 = vadd.f32 %v1461, %v1519
    %v1521 = vpop.f32.mrf.mxu0
    %v1522 = vadd.f32 %v1463, %v1521
    %1523 = vmatmul.bf16.gmra.mxu0 %v529
    %v1524 = vpop.f32.mrf.mxu0
    %v1525 = vadd.f32 %v1466, %v1524
    %v1526 = vpop.f32.mrf.mxu0
    %v1527 = vadd.f32 %v1468, %v1526
    %1528 = vdwg.mxu0
    %1529 = vmatpush.bf16.msra.mxu0 %v1057
    %1530 = vmatpush.bf16.msra.mxu0 %v1055
    %1531 = vmatpush.bf16.msra.mxu0 %v1053
    %1532 = vmatpush.bf16.msra.mxu0 %v1051
    %1533 = vmatpush.bf16.msra.mxu0 %v1049
    %1534 = vmatpush.bf16.msra.mxu0 %v1047
    %1535 = vmatpush.bf16.msra.mxu0 %v1045
    %1536 = vmatpush.bf16.msra.mxu0 %v1043
    %1537 = vmatmul.bf16.gmra.mxu0 %v458
    %v1538 = vpop.f32.mrf.mxu0
    %v1539 = vadd.f32 %v1480, %v1538
    %v1540 = vpop.f32.mrf.mxu0
    %v1541 = vadd.f32 %v1482, %v1540
    %1542 = vmatmul.bf16.gmra.mxu0 %v466
    %v1543 = vpop.f32.mrf.mxu0
    %v1544 = vadd.f32 %v1485, %v1543
    %v1545 = vpop.f32.mrf.mxu0
    %v1546 = vadd.f32 %v1487, %v1545
    %1547 = vmatmul.bf16.gmra.mxu0 %v474
    %v1548 = vpop.f32.mrf.mxu0
    %v1549 = vadd.f32 %v1490, %v1548
    %v1550 = vpop.f32.mrf.mxu0
    %v1551 = vadd.f32 %v1492, %v1550
    %1552 = vmatmul.bf16.gmra.mxu0 %v482
    %v1553 = vpop.f32.mrf.mxu0
    %v1554 = vadd.f32 %v1495, %v1553
    %v1555 = vpop.f32.mrf.mxu0
    %v1556 = vadd.f32 %v1497, %v1555
    %1557 = vmatmul.bf16.gmra.mxu0 %v490
    %v1558 = vpop.f32.mrf.mxu0
    %v1559 = vadd.f32 %v1500, %v1558
    %v1560 = vpop.f32.mrf.mxu0
    %v1561 = vadd.f32 %v1502, %v1560
    %1562 = vmatmul.bf16.gmra.mxu0 %v498
    %v1563 = vpop.f32.mrf.mxu0
    %v1564 = vadd.f32 %v1505, %v1563
    %v1565 = vpop.f32.mrf.mxu0
    %v1566 = vadd.f32 %v1507, %v1565
    %1567 = vmatmul.bf16.gmra.mxu0 %v506
    %v1568 = vpop.f32.mrf.mxu0
    %v1569 = vadd.f32 %v1510, %v1568
    %v1570 = vpop.f32.mrf.mxu0
    %v1571 = vadd.f32 %v1512, %v1570
    %1572 = vmatmul.bf16.gmra.mxu0 %v514
    %v1573 = vpop.f32.mrf.mxu0
    %v1574 = vadd.f32 %v1515, %v1573
    %v1575 = vpop.f32.mrf.mxu0
    %v1576 = vadd.f32 %v1517, %v1575
    %1577 = vmatmul.bf16.gmra.mxu0 %v522
    %v1578 = vpop.f32.mrf.mxu0
    %v1579 = vadd.f32 %v1520, %v1578
    %v1580 = vpop.f32.mrf.mxu0
    %v1581 = vadd.f32 %v1522, %v1580
    %1582 = vmatmul.bf16.gmra.mxu0 %v530
    %v1583 = vpop.f32.mrf.mxu0
    %v1584 = vadd.f32 %v1525, %v1583
    %v1585 = vpop.f32.mrf.mxu0
    %v1586 = vadd.f32 %v1527, %v1585
    %1587 = vdwg.mxu0
    %1588 = vmatpush.bf16.msra.mxu0 %v1073
    %1589 = vmatpush.bf16.msra.mxu0 %v1071
    %1590 = vmatpush.bf16.msra.mxu0 %v1069
    %1591 = vmatpush.bf16.msra.mxu0 %v1067
    %1592 = vmatpush.bf16.msra.mxu0 %v1065
    %1593 = vmatpush.bf16.msra.mxu0 %v1063
    %1594 = vmatpush.bf16.msra.mxu0 %v1061
    %1595 = vmatpush.bf16.msra.mxu0 %v1059
    %1596 = vmatmul.bf16.gmra.mxu0 %v459
    %v1597 = vpop.f32.mrf.mxu0
    %v1598 = vadd.f32 %v1539, %v1597
    %v1599 = vpop.f32.mrf.mxu0
    %v1600 = vadd.f32 %v1541, %v1599
    %1601 = vmatmul.bf16.gmra.mxu0 %v467
    %v1602 = vpop.f32.mrf.mxu0
    %v1603 = vadd.f32 %v1544, %v1602
    %v1604 = vpop.f32.mrf.mxu0
    %v1605 = vadd.f32 %v1546, %v1604
    %1606 = vmatmul.bf16.gmra.mxu0 %v475
    %v1607 = vpop.f32.mrf.mxu0
    %v1608 = vadd.f32 %v1549, %v1607
    %v1609 = vpop.f32.mrf.mxu0
    %v1610 = vadd.f32 %v1551, %v1609
    %1611 = vmatmul.bf16.gmra.mxu0 %v483
    %v1612 = vpop.f32.mrf.mxu0
    %v1613 = vadd.f32 %v1554, %v1612
    %v1614 = vpop.f32.mrf.mxu0
    %v1615 = vadd.f32 %v1556, %v1614
    %1616 = vmatmul.bf16.gmra.mxu0 %v491
    %v1617 = vpop.f32.mrf.mxu0
    %v1618 = vadd.f32 %v1559, %v1617
    %v1619 = vpop.f32.mrf.mxu0
    %v1620 = vadd.f32 %v1561, %v1619
    %1621 = vmatmul.bf16.gmra.mxu0 %v499
    %v1622 = vpop.f32.mrf.mxu0
    %v1623 = vadd.f32 %v1564, %v1622
    %v1624 = vpop.f32.mrf.mxu0
    %v1625 = vadd.f32 %v1566, %v1624
    %1626 = vmatmul.bf16.gmra.mxu0 %v507
    %v1627 = vpop.f32.mrf.mxu0
    %v1628 = vadd.f32 %v1569, %v1627
    %v1629 = vpop.f32.mrf.mxu0
    %v1630 = vadd.f32 %v1571, %v1629
    %1631 = vmatmul.bf16.gmra.mxu0 %v515
    %v1632 = vpop.f32.mrf.mxu0
    %v1633 = vadd.f32 %v1574, %v1632
    %v1634 = vpop.f32.mrf.mxu0
    %v1635 = vadd.f32 %v1576, %v1634
    %1636 = vmatmul.bf16.gmra.mxu0 %v523
    %v1637 = vpop.f32.mrf.mxu0
    %v1638 = vadd.f32 %v1579, %v1637
    %v1639 = vpop.f32.mrf.mxu0
    %v1640 = vadd.f32 %v1581, %v1639
    %1641 = vmatmul.bf16.gmra.mxu0 %v531
    %v1642 = vpop.f32.mrf.mxu0
    %v1643 = vadd.f32 %v1584, %v1642
    %v1644 = vpop.f32.mrf.mxu0
    %v1645 = vadd.f32 %v1586, %v1644
    %1646 = vdwg.mxu0
    %1647 = vmatpush.bf16.msra.mxu0 0
    %1648 = vmatpush.bf16.msra.mxu0 0
    %1649 = vmatpush.bf16.msra.mxu0 0
    %1650 = vmatpush.bf16.msra.mxu0 0
    %1651 = vmatpush.bf16.msra.mxu0 %v1081
    %1652 = vmatpush.bf16.msra.mxu0 %v1079
    %1653 = vmatpush.bf16.msra.mxu0 %v1077
    %1654 = vmatpush.bf16.msra.mxu0 %v1075
    %1655 = vmatmul.bf16.gmra.mxu0 %v1205
    %v1656 = vpop.f32.mrf.mxu0
    %v1657 = vadd.f32 %v1598, %v1656
    %v1658 = vpop.f32.mrf.mxu0
    %v1659 = vadd.f32 %v1600, %v1658
    %1660 = vmatmul.bf16.gmra.mxu0 %v1208
    %v1661 = vpop.f32.mrf.mxu0
    %v1662 = vadd.f32 %v1603, %v1661
    %v1663 = vpop.f32.mrf.mxu0
    %v1664 = vadd.f32 %v1605, %v1663
    %1665 = vmatmul.bf16.gmra.mxu0 %v1211
    %v1666 = vpop.f32.mrf.mxu0
    %v1667 = vadd.f32 %v1608, %v1666
    %v1668 = vpop.f32.mrf.mxu0
    %v1669 = vadd.f32 %v1610, %v1668
    %1670 = vmatmul.bf16.gmra.mxu0 %v1214
    %v1671 = vpop.f32.mrf.mxu0
    %v1672 = vadd.f32 %v1613, %v1671
    %v1673 = vpop.f32.mrf.mxu0
    %v1674 = vadd.f32 %v1615, %v1673
    %1675 = vmatmul.bf16.gmra.mxu0 %v1217
    %v1676 = vpop.f32.mrf.mxu0
    %v1677 = vadd.f32 %v1618, %v1676
    %v1678 = vpop.f32.mrf.mxu0
    %v1679 = vadd.f32 %v1620, %v1678
    %1680 = vmatmul.bf16.gmra.mxu0 %v1220
    %v1681 = vpop.f32.mrf.mxu0
    %v1682 = vadd.f32 %v1623, %v1681
    %v1683 = vpop.f32.mrf.mxu0
    %v1684 = vadd.f32 %v1625, %v1683
    %1685 = vmatmul.bf16.gmra.mxu0 %v1223
    %v1686 = vpop.f32.mrf.mxu0
    %v1687 = vadd.f32 %v1628, %v1686
    %v1688 = vpop.f32.mrf.mxu0
    %v1689 = vadd.f32 %v1630, %v1688
    %1690 = vmatmul.bf16.gmra.mxu0 %v1226
    %v1691 = vpop.f32.mrf.mxu0
    %v1692 = vadd.f32 %v1633, %v1691
    %v1693 = vpop.f32.mrf.mxu0
    %v1694 = vadd.f32 %v1635, %v1693
    %1695 = vmatmul.bf16.gmra.mxu0 %v1229
    %v1696 = vpop.f32.mrf.mxu0
    %v1697 = vadd.f32 %v1638, %v1696
    %v1698 = vpop.f32.mrf.mxu0
    %v1699 = vadd.f32 %v1640, %v1698
    %1700 = vmatmul.bf16.gmra.mxu0 %v1232
    %v1701 = vpop.f32.mrf.mxu0
    %v1702 = vadd.f32 %v1643, %v1701
    %v1703 = vpop.f32.mrf.mxu0
    %v1704 = vadd.f32 %v1645, %v1703
    %1705 = vdwg.mxu0
    %1706 = vmatpush.bf16.msra.mxu0 %v978
    %1707 = vmatpush.bf16.msra.mxu0 %v976
    %1708 = vmatpush.bf16.msra.mxu0 %v974
    %1709 = vmatpush.bf16.msra.mxu0 %v972
    %1710 = vmatpush.bf16.msra.mxu0 %v970
    %1711 = vmatpush.bf16.msra.mxu0 %v968
    %1712 = vmatpush.bf16.msra.mxu0 %v966
    %1713 = vmatpush.bf16.msra.mxu0 %v964
    %1714 = vmatmul.bf16.gmra.mxu0 %v453
    %v1715 = vpop.f32.mrf.mxu0
    %v1716 = vadd.f32 0.0, %v1715
    %v1717 = vpop.f32.mrf.mxu0
    %v1718 = vadd.f32 0.0, %v1717
    %1719 = vmatmul.bf16.gmra.mxu0 %v461
    %v1720 = vpop.f32.mrf.mxu0
    %v1721 = vadd.f32 0.0, %v1720
    %v1722 = vpop.f32.mrf.mxu0
    %v1723 = vadd.f32 0.0, %v1722
    %1724 = vmatmul.bf16.gmra.mxu0 %v469
    %v1725 = vpop.f32.mrf.mxu0
    %v1726 = vadd.f32 0.0, %v1725
    %v1727 = vpop.f32.mrf.mxu0
    %v1728 = vadd.f32 0.0, %v1727
    %1729 = vmatmul.bf16.gmra.mxu0 %v477
    %v1730 = vpop.f32.mrf.mxu0
    %v1731 = vadd.f32 0.0, %v1730
    %v1732 = vpop.f32.mrf.mxu0
    %v1733 = vadd.f32 0.0, %v1732
    %1734 = vmatmul.bf16.gmra.mxu0 %v485
    %v1735 = vpop.f32.mrf.mxu0
    %v1736 = vadd.f32 0.0, %v1735
    %v1737 = vpop.f32.mrf.mxu0
    %v1738 = vadd.f32 0.0, %v1737
    %1739 = vmatmul.bf16.gmra.mxu0 %v493
    %v1740 = vpop.f32.mrf.mxu0
    %v1741 = vadd.f32 0.0, %v1740
    %v1742 = vpop.f32.mrf.mxu0
    %v1743 = vadd.f32 0.0, %v1742
    %1744 = vmatmul.bf16.gmra.mxu0 %v501
    %v1745 = vpop.f32.mrf.mxu0
    %v1746 = vadd.f32 0.0, %v1745
    %v1747 = vpop.f32.mrf.mxu0
    %v1748 = vadd.f32 0.0, %v1747
    %1749 = vmatmul.bf16.gmra.mxu0 %v509
    %v1750 = vpop.f32.mrf.mxu0
    %v1751 = vadd.f32 0.0, %v1750
    %v1752 = vpop.f32.mrf.mxu0
    %v1753 = vadd.f32 0.0, %v1752
    %1754 = vmatmul.bf16.gmra.mxu0 %v517
    %v1755 = vpop.f32.mrf.mxu0
    %v1756 = vadd.f32 0.0, %v1755
    %v1757 = vpop.f32.mrf.mxu0
    %v1758 = vadd.f32 0.0, %v1757
    %1759 = vmatmul.bf16.gmra.mxu0 %v525
    %v1760 = vpop.f32.mrf.mxu0
    %v1761 = vadd.f32 0.0, %v1760
    %v1762 = vpop.f32.mrf.mxu0
    %v1763 = vadd.f32 0.0, %v1762
    %1764 = vdwg.mxu0
    %1765 = vmatpush.bf16.msra.mxu0 %v994
    %1766 = vmatpush.bf16.msra.mxu0 %v992
    %1767 = vmatpush.bf16.msra.mxu0 %v990
    %1768 = vmatpush.bf16.msra.mxu0 %v988
    %1769 = vmatpush.bf16.msra.mxu0 %v986
    %1770 = vmatpush.bf16.msra.mxu0 %v984
    %1771 = vmatpush.bf16.msra.mxu0 %v982
    %1772 = vmatpush.bf16.msra.mxu0 %v980
    %1773 = vmatmul.bf16.gmra.mxu0 %v454
    %v1774 = vpop.f32.mrf.mxu0
    %v1775 = vadd.f32 %v1716, %v1774
    %v1776 = vpop.f32.mrf.mxu0
    %v1777 = vadd.f32 %v1718, %v1776
    %1778 = vmatmul.bf16.gmra.mxu0 %v462
    %v1779 = vpop.f32.mrf.mxu0
    %v1780 = vadd.f32 %v1721, %v1779
    %v1781 = vpop.f32.mrf.mxu0
    %v1782 = vadd.f32 %v1723, %v1781
    %1783 = vmatmul.bf16.gmra.mxu0 %v470
    %v1784 = vpop.f32.mrf.mxu0
    %v1785 = vadd.f32 %v1726, %v1784
    %v1786 = vpop.f32.mrf.mxu0
    %v1787 = vadd.f32 %v1728, %v1786
    %1788 = vmatmul.bf16.gmra.mxu0 %v478
    %v1789 = vpop.f32.mrf.mxu0
    %v1790 = vadd.f32 %v1731, %v1789
    %v1791 = vpop.f32.mrf.mxu0
    %v1792 = vadd.f32 %v1733, %v1791
    %1793 = vmatmul.bf16.gmra.mxu0 %v486
    %v1794 = vpop.f32.mrf.mxu0
    %v1795 = vadd.f32 %v1736, %v1794
    %v1796 = vpop.f32.mrf.mxu0
    %v1797 = vadd.f32 %v1738, %v1796
    %1798 = vmatmul.bf16.gmra.mxu0 %v494
    %v1799 = vpop.f32.mrf.mxu0
    %v1800 = vadd.f32 %v1741, %v1799
    %v1801 = vpop.f32.mrf.mxu0
    %v1802 = vadd.f32 %v1743, %v1801
    %1803 = vmatmul.bf16.gmra.mxu0 %v502
    %v1804 = vpop.f32.mrf.mxu0
    %v1805 = vadd.f32 %v1746, %v1804
    %v1806 = vpop.f32.mrf.mxu0
    %v1807 = vadd.f32 %v1748, %v1806
    %1808 = vmatmul.bf16.gmra.mxu0 %v510
    %v1809 = vpop.f32.mrf.mxu0
    %v1810 = vadd.f32 %v1751, %v1809
    %v1811 = vpop.f32.mrf.mxu0
    %v1812 = vadd.f32 %v1753, %v1811
    %1813 = vmatmul.bf16.gmra.mxu0 %v518
    %v1814 = vpop.f32.mrf.mxu0
    %v1815 = vadd.f32 %v1756, %v1814
    %v1816 = vpop.f32.mrf.mxu0
    %v1817 = vadd.f32 %v1758, %v1816
    %1818 = vmatmul.bf16.gmra.mxu0 %v526
    %v1819 = vpop.f32.mrf.mxu0
    %v1820 = vadd.f32 %v1761, %v1819
    %v1821 = vpop.f32.mrf.mxu0
    %v1822 = vadd.f32 %v1763, %v1821
    %1823 = vdwg.mxu0
    %1824 = vmatpush.bf16.msra.mxu0 %v1010
    %1825 = vmatpush.bf16.msra.mxu0 %v1008
    %1826 = vmatpush.bf16.msra.mxu0 %v1006
    %1827 = vmatpush.bf16.msra.mxu0 %v1004
    %1828 = vmatpush.bf16.msra.mxu0 %v1002
    %1829 = vmatpush.bf16.msra.mxu0 %v1000
    %1830 = vmatpush.bf16.msra.mxu0 %v998
    %1831 = vmatpush.bf16.msra.mxu0 %v996
    %1832 = vmatmul.bf16.gmra.mxu0 %v455
    %v1833 = vpop.f32.mrf.mxu0
    %v1834 = vadd.f32 %v1775, %v1833
    %v1835 = vpop.f32.mrf.mxu0
    %v1836 = vadd.f32 %v1777, %v1835
    %1837 = vmatmul.bf16.gmra.mxu0 %v463
    %v1838 = vpop.f32.mrf.mxu0
    %v1839 = vadd.f32 %v1780, %v1838
    %v1840 = vpop.f32.mrf.mxu0
    %v1841 = vadd.f32 %v1782, %v1840
    %1842 = vmatmul.bf16.gmra.mxu0 %v471
    %v1843 = vpop.f32.mrf.mxu0
    %v1844 = vadd.f32 %v1785, %v1843
    %v1845 = vpop.f32.mrf.mxu0
    %v1846 = vadd.f32 %v1787, %v1845
    %1847 = vmatmul.bf16.gmra.mxu0 %v479
    %v1848 = vpop.f32.mrf.mxu0
    %v1849 = vadd.f32 %v1790, %v1848
    %v1850 = vpop.f32.mrf.mxu0
    %v1851 = vadd.f32 %v1792, %v1850
    %1852 = vmatmul.bf16.gmra.mxu0 %v487
    %v1853 = vpop.f32.mrf.mxu0
    %v1854 = vadd.f32 %v1795, %v1853
    %v1855 = vpop.f32.mrf.mxu0
    %v1856 = vadd.f32 %v1797, %v1855
    %1857 = vmatmul.bf16.gmra.mxu0 %v495
    %v1858 = vpop.f32.mrf.mxu0
    %v1859 = vadd.f32 %v1800, %v1858
    %v1860 = vpop.f32.mrf.mxu0
    %v1861 = vadd.f32 %v1802, %v1860
    %1862 = vmatmul.bf16.gmra.mxu0 %v503
    %v1863 = vpop.f32.mrf.mxu0
    %v1864 = vadd.f32 %v1805, %v1863
    %v1865 = vpop.f32.mrf.mxu0
    %v1866 = vadd.f32 %v1807, %v1865
    %1867 = vmatmul.bf16.gmra.mxu0 %v511
    %v1868 = vpop.f32.mrf.mxu0
    %v1869 = vadd.f32 %v1810, %v1868
    %v1870 = vpop.f32.mrf.mxu0
    %v1871 = vadd.f32 %v1812, %v1870
    %1872 = vmatmul.bf16.gmra.mxu0 %v519
    %v1873 = vpop.f32.mrf.mxu0
    %v1874 = vadd.f32 %v1815, %v1873
    %v1875 = vpop.f32.mrf.mxu0
    %v1876 = vadd.f32 %v1817, %v1875
    %1877 = vmatmul.bf16.gmra.mxu0 %v527
    %v1878 = vpop.f32.mrf.mxu0
    %v1879 = vadd.f32 %v1820, %v1878
    %v1880 = vpop.f32.mrf.mxu0
    %v1881 = vadd.f32 %v1822, %v1880
    %1882 = vdwg.mxu0
    %1883 = vmatpush.bf16.msra.mxu0 %v1026
    %1884 = vmatpush.bf16.msra.mxu0 %v1024
    %1885 = vmatpush.bf16.msra.mxu0 %v1022
    %1886 = vmatpush.bf16.msra.mxu0 %v1020
    %1887 = vmatpush.bf16.msra.mxu0 %v1018
    %1888 = vmatpush.bf16.msra.mxu0 %v1016
    %1889 = vmatpush.bf16.msra.mxu0 %v1014
    %1890 = vmatpush.bf16.msra.mxu0 %v1012
    %1891 = vmatmul.bf16.gmra.mxu0 %v456
    %v1892 = vpop.f32.mrf.mxu0
    %v1893 = vadd.f32 %v1834, %v1892
    %v1894 = vpop.f32.mrf.mxu0
    %v1895 = vadd.f32 %v1836, %v1894
    %1896 = vmatmul.bf16.gmra.mxu0 %v464
    %v1897 = vpop.f32.mrf.mxu0
    %v1898 = vadd.f32 %v1839, %v1897
    %v1899 = vpop.f32.mrf.mxu0
    %v1900 = vadd.f32 %v1841, %v1899
    %1901 = vmatmul.bf16.gmra.mxu0 %v472
    %v1902 = vpop.f32.mrf.mxu0
    %v1903 = vadd.f32 %v1844, %v1902
    %v1904 = vpop.f32.mrf.mxu0
    %v1905 = vadd.f32 %v1846, %v1904
    %1906 = vmatmul.bf16.gmra.mxu0 %v480
    %v1907 = vpop.f32.mrf.mxu0
    %v1908 = vadd.f32 %v1849, %v1907
    %v1909 = vpop.f32.mrf.mxu0
    %v1910 = vadd.f32 %v1851, %v1909
    %1911 = vmatmul.bf16.gmra.mxu0 %v488
    %v1912 = vpop.f32.mrf.mxu0
    %v1913 = vadd.f32 %v1854, %v1912
    %v1914 = vpop.f32.mrf.mxu0
    %v1915 = vadd.f32 %v1856, %v1914
    %1916 = vmatmul.bf16.gmra.mxu0 %v496
    %v1917 = vpop.f32.mrf.mxu0
    %v1918 = vadd.f32 %v1859, %v1917
    %v1919 = vpop.f32.mrf.mxu0
    %v1920 = vadd.f32 %v1861, %v1919
    %1921 = vmatmul.bf16.gmra.mxu0 %v504
    %v1922 = vpop.f32.mrf.mxu0
    %v1923 = vadd.f32 %v1864, %v1922
    %v1924 = vpop.f32.mrf.mxu0
    %v1925 = vadd.f32 %v1866, %v1924
    %1926 = vmatmul.bf16.gmra.mxu0 %v512
    %v1927 = vpop.f32.mrf.mxu0
    %v1928 = vadd.f32 %v1869, %v1927
    %v1929 = vpop.f32.mrf.mxu0
    %v1930 = vadd.f32 %v1871, %v1929
    %1931 = vmatmul.bf16.gmra.mxu0 %v520
    %v1932 = vpop.f32.mrf.mxu0
    %v1933 = vadd.f32 %v1874, %v1932
    %v1934 = vpop.f32.mrf.mxu0
    %v1935 = vadd.f32 %v1876, %v1934
    %1936 = vmatmul.bf16.gmra.mxu0 %v528
    %v1937 = vpop.f32.mrf.mxu0
    %v1938 = vadd.f32 %v1879, %v1937
    %v1939 = vpop.f32.mrf.mxu0
    %v1940 = vadd.f32 %v1881, %v1939
    %1941 = vdwg.mxu0
    %1942 = vmatpush.bf16.msra.mxu0 %v1042
    %1943 = vmatpush.bf16.msra.mxu0 %v1040
    %1944 = vmatpush.bf16.msra.mxu0 %v1038
    %1945 = vmatpush.bf16.msra.mxu0 %v1036
    %1946 = vmatpush.bf16.msra.mxu0 %v1034
    %1947 = vmatpush.bf16.msra.mxu0 %v1032
    %1948 = vmatpush.bf16.msra.mxu0 %v1030
    %1949 = vmatpush.bf16.msra.mxu0 %v1028
    %1950 = vmatmul.bf16.gmra.mxu0 %v457
    %v1951 = vpop.f32.mrf.mxu0
    %v1952 = vadd.f32 %v1893, %v1951
    %v1953 = vpop.f32.mrf.mxu0
    %v1954 = vadd.f32 %v1895, %v1953
    %1955 = vmatmul.bf16.gmra.mxu0 %v465
    %v1956 = vpop.f32.mrf.mxu0
    %v1957 = vadd.f32 %v1898, %v1956
    %v1958 = vpop.f32.mrf.mxu0
    %v1959 = vadd.f32 %v1900, %v1958
    %1960 = vmatmul.bf16.gmra.mxu0 %v473
    %v1961 = vpop.f32.mrf.mxu0
    %v1962 = vadd.f32 %v1903, %v1961
    %v1963 = vpop.f32.mrf.mxu0
    %v1964 = vadd.f32 %v1905, %v1963
    %1965 = vmatmul.bf16.gmra.mxu0 %v481
    %v1966 = vpop.f32.mrf.mxu0
    %v1967 = vadd.f32 %v1908, %v1966
    %v1968 = vpop.f32.mrf.mxu0
    %v1969 = vadd.f32 %v1910, %v1968
    %1970 = vmatmul.bf16.gmra.mxu0 %v489
    %v1971 = vpop.f32.mrf.mxu0
    %v1972 = vadd.f32 %v1913, %v1971
    %v1973 = vpop.f32.mrf.mxu0
    %v1974 = vadd.f32 %v1915, %v1973
    %1975 = vmatmul.bf16.gmra.mxu0 %v497
    %v1976 = vpop.f32.mrf.mxu0
    %v1977 = vadd.f32 %v1918, %v1976
    %v1978 = vpop.f32.mrf.mxu0
    %v1979 = vadd.f32 %v1920, %v1978
    %1980 = vmatmul.bf16.gmra.mxu0 %v505
    %v1981 = vpop.f32.mrf.mxu0
    %v1982 = vadd.f32 %v1923, %v1981
    %v1983 = vpop.f32.mrf.mxu0
    %v1984 = vadd.f32 %v1925, %v1983
    %1985 = vmatmul.bf16.gmra.mxu0 %v513
    %v1986 = vpop.f32.mrf.mxu0
    %v1987 = vadd.f32 %v1928, %v1986
    %v1988 = vpop.f32.mrf.mxu0
    %v1989 = vadd.f32 %v1930, %v1988
    %1990 = vmatmul.bf16.gmra.mxu0 %v521
    %v1991 = vpop.f32.mrf.mxu0
    %v1992 = vadd.f32 %v1933, %v1991
    %v1993 = vpop.f32.mrf.mxu0
    %v1994 = vadd.f32 %v1935, %v1993
    %1995 = vmatmul.bf16.gmra.mxu0 %v529
    %v1996 = vpop.f32.mrf.mxu0
    %v1997 = vadd.f32 %v1938, %v1996
    %v1998 = vpop.f32.mrf.mxu0
    %v1999 = vadd.f32 %v1940, %v1998
    %2000 = vdwg.mxu0
    %2001 = vmatpush.bf16.msra.mxu0 %v1058
    %2002 = vmatpush.bf16.msra.mxu0 %v1056
    %2003 = vmatpush.bf16.msra.mxu0 %v1054
    %2004 = vmatpush.bf16.msra.mxu0 %v1052
    %2005 = vmatpush.bf16.msra.mxu0 %v1050
    %2006 = vmatpush.bf16.msra.mxu0 %v1048
    %2007 = vmatpush.bf16.msra.mxu0 %v1046
    %2008 = vmatpush.bf16.msra.mxu0 %v1044
    %2009 = vmatmul.bf16.gmra.mxu0 %v458
    %v2010 = vpop.f32.mrf.mxu0
    %v2011 = vadd.f32 %v1952, %v2010
    %v2012 = vpop.f32.mrf.mxu0
    %v2013 = vadd.f32 %v1954, %v2012
    %2014 = vmatmul.bf16.gmra.mxu0 %v466
    %v2015 = vpop.f32.mrf.mxu0
    %v2016 = vadd.f32 %v1957, %v2015
    %v2017 = vpop.f32.mrf.mxu0
    %v2018 = vadd.f32 %v1959, %v2017
    %2019 = vmatmul.bf16.gmra.mxu0 %v474
    %v2020 = vpop.f32.mrf.mxu0
    %v2021 = vadd.f32 %v1962, %v2020
    %v2022 = vpop.f32.mrf.mxu0
    %v2023 = vadd.f32 %v1964, %v2022
    %2024 = vmatmul.bf16.gmra.mxu0 %v482
    %v2025 = vpop.f32.mrf.mxu0
    %v2026 = vadd.f32 %v1967, %v2025
    %v2027 = vpop.f32.mrf.mxu0
    %v2028 = vadd.f32 %v1969, %v2027
    %2029 = vmatmul.bf16.gmra.mxu0 %v490
    %v2030 = vpop.f32.mrf.mxu0
    %v2031 = vadd.f32 %v1972, %v2030
    %v2032 = vpop.f32.mrf.mxu0
    %v2033 = vadd.f32 %v1974, %v2032
    %2034 = vmatmul.bf16.gmra.mxu0 %v498
    %v2035 = vpop.f32.mrf.mxu0
    %v2036 = vadd.f32 %v1977, %v2035
    %v2037 = vpop.f32.mrf.mxu0
    %v2038 = vadd.f32 %v1979, %v2037
    %2039 = vmatmul.bf16.gmra.mxu0 %v506
    %v2040 = vpop.f32.mrf.mxu0
    %v2041 = vadd.f32 %v1982, %v2040
    %v2042 = vpop.f32.mrf.mxu0
    %v2043 = vadd.f32 %v1984, %v2042
    %2044 = vmatmul.bf16.gmra.mxu0 %v514
    %v2045 = vpop.f32.mrf.mxu0
    %v2046 = vadd.f32 %v1987, %v2045
    %v2047 = vpop.f32.mrf.mxu0
    %v2048 = vadd.f32 %v1989, %v2047
    %2049 = vmatmul.bf16.gmra.mxu0 %v522
    %v2050 = vpop.f32.mrf.mxu0
    %v2051 = vadd.f32 %v1992, %v2050
    %v2052 = vpop.f32.mrf.mxu0
    %v2053 = vadd.f32 %v1994, %v2052
    %2054 = vmatmul.bf16.gmra.mxu0 %v530
    %v2055 = vpop.f32.mrf.mxu0
    %v2056 = vadd.f32 %v1997, %v2055
    %v2057 = vpop.f32.mrf.mxu0
    %v2058 = vadd.f32 %v1999, %v2057
    %2059 = vdwg.mxu0
    %2060 = vmatpush.bf16.msra.mxu0 %v1074
    %2061 = vmatpush.bf16.msra.mxu0 %v1072
    %2062 = vmatpush.bf16.msra.mxu0 %v1070
    %2063 = vmatpush.bf16.msra.mxu0 %v1068
    %2064 = vmatpush.bf16.msra.mxu0 %v1066
    %2065 = vmatpush.bf16.msra.mxu0 %v1064
    %2066 = vmatpush.bf16.msra.mxu0 %v1062
    %2067 = vmatpush.bf16.msra.mxu0 %v1060
    %2068 = vmatmul.bf16.gmra.mxu0 %v459
    %v2069 = vpop.f32.mrf.mxu0
    %v2070 = vadd.f32 %v2011, %v2069
    %v2071 = vpop.f32.mrf.mxu0
    %v2072 = vadd.f32 %v2013, %v2071
    %2073 = vmatmul.bf16.gmra.mxu0 %v467
    %v2074 = vpop.f32.mrf.mxu0
    %v2075 = vadd.f32 %v2016, %v2074
    %v2076 = vpop.f32.mrf.mxu0
    %v2077 = vadd.f32 %v2018, %v2076
    %2078 = vmatmul.bf16.gmra.mxu0 %v475
    %v2079 = vpop.f32.mrf.mxu0
    %v2080 = vadd.f32 %v2021, %v2079
    %v2081 = vpop.f32.mrf.mxu0
    %v2082 = vadd.f32 %v2023, %v2081
    %2083 = vmatmul.bf16.gmra.mxu0 %v483
    %v2084 = vpop.f32.mrf.mxu0
    %v2085 = vadd.f32 %v2026, %v2084
    %v2086 = vpop.f32.mrf.mxu0
    %v2087 = vadd.f32 %v2028, %v2086
    %2088 = vmatmul.bf16.gmra.mxu0 %v491
    %v2089 = vpop.f32.mrf.mxu0
    %v2090 = vadd.f32 %v2031, %v2089
    %v2091 = vpop.f32.mrf.mxu0
    %v2092 = vadd.f32 %v2033, %v2091
    %2093 = vmatmul.bf16.gmra.mxu0 %v499
    %v2094 = vpop.f32.mrf.mxu0
    %v2095 = vadd.f32 %v2036, %v2094
    %v2096 = vpop.f32.mrf.mxu0
    %v2097 = vadd.f32 %v2038, %v2096
    %2098 = vmatmul.bf16.gmra.mxu0 %v507
    %v2099 = vpop.f32.mrf.mxu0
    %v2100 = vadd.f32 %v2041, %v2099
    %v2101 = vpop.f32.mrf.mxu0
    %v2102 = vadd.f32 %v2043, %v2101
    %2103 = vmatmul.bf16.gmra.mxu0 %v515
    %v2104 = vpop.f32.mrf.mxu0
    %v2105 = vadd.f32 %v2046, %v2104
    %v2106 = vpop.f32.mrf.mxu0
    %v2107 = vadd.f32 %v2048, %v2106
    %2108 = vmatmul.bf16.gmra.mxu0 %v523
    %v2109 = vpop.f32.mrf.mxu0
    %v2110 = vadd.f32 %v2051, %v2109
    %v2111 = vpop.f32.mrf.mxu0
    %v2112 = vadd.f32 %v2053, %v2111
    %2113 = vmatmul.bf16.gmra.mxu0 %v531
    %v2114 = vpop.f32.mrf.mxu0
    %v2115 = vadd.f32 %v2056, %v2114
    %v2116 = vpop.f32.mrf.mxu0
    %v2117 = vadd.f32 %v2058, %v2116
    %2118 = vdwg.mxu0
    %2119 = vmatpush.bf16.msra.mxu0 0
    %2120 = vmatpush.bf16.msra.mxu0 0
    %2121 = vmatpush.bf16.msra.mxu0 0
    %2122 = vmatpush.bf16.msra.mxu0 0
    %2123 = vmatpush.bf16.msra.mxu0 %v1082
    %2124 = vmatpush.bf16.msra.mxu0 %v1080
    %2125 = vmatpush.bf16.msra.mxu0 %v1078
    %2126 = vmatpush.bf16.msra.mxu0 %v1076
    %2127 = vmatmul.bf16.gmra.mxu0 %v1205
    %v2128 = vpop.f32.mrf.mxu0
    %v2129 = vadd.f32 %v2070, %v2128
    %v2130 = vpop.f32.mrf.mxu0
    %v2131 = vadd.f32 %v2072, %v2130
    %2132 = vmatmul.bf16.gmra.mxu0 %v1208
    %v2133 = vpop.f32.mrf.mxu0
    %v2134 = vadd.f32 %v2075, %v2133
    %v2135 = vpop.f32.mrf.mxu0
    %v2136 = vadd.f32 %v2077, %v2135
    %2137 = vmatmul.bf16.gmra.mxu0 %v1211
    %v2138 = vpop.f32.mrf.mxu0
    %v2139 = vadd.f32 %v2080, %v2138
    %v2140 = vpop.f32.mrf.mxu0
    %v2141 = vadd.f32 %v2082, %v2140
    %2142 = vmatmul.bf16.gmra.mxu0 %v1214
    %v2143 = vpop.f32.mrf.mxu0
    %v2144 = vadd.f32 %v2085, %v2143
    %v2145 = vpop.f32.mrf.mxu0
    %v2146 = vadd.f32 %v2087, %v2145
    %2147 = vmatmul.bf16.gmra.mxu0 %v1217
    %v2148 = vpop.f32.mrf.mxu0
    %v2149 = vadd.f32 %v2090, %v2148
    %v2150 = vpop.f32.mrf.mxu0
    %v2151 = vadd.f32 %v2092, %v2150
    %2152 = vmatmul.bf16.gmra.mxu0 %v1220
    %v2153 = vpop.f32.mrf.mxu0
    %v2154 = vadd.f32 %v2095, %v2153
    %v2155 = vpop.f32.mrf.mxu0
    %v2156 = vadd.f32 %v2097, %v2155
    %2157 = vmatmul.bf16.gmra.mxu0 %v1223
    %v2158 = vpop.f32.mrf.mxu0
    %v2159 = vadd.f32 %v2100, %v2158
    %v2160 = vpop.f32.mrf.mxu0
    %v2161 = vadd.f32 %v2102, %v2160
    %2162 = vmatmul.bf16.gmra.mxu0 %v1226
    %v2163 = vpop.f32.mrf.mxu0
    %v2164 = vadd.f32 %v2105, %v2163
    %v2165 = vpop.f32.mrf.mxu0
    %v2166 = vadd.f32 %v2107, %v2165
    %2167 = vmatmul.bf16.gmra.mxu0 %v1229
    %v2168 = vpop.f32.mrf.mxu0
    %v2169 = vadd.f32 %v2110, %v2168
    %v2170 = vpop.f32.mrf.mxu0
    %v2171 = vadd.f32 %v2112, %v2170
    %2172 = vmatmul.bf16.gmra.mxu0 %v1232
    %v2173 = vpop.f32.mrf.mxu0
    %v2174 = vadd.f32 %v2115, %v2173
    %v2175 = vpop.f32.mrf.mxu0
    %v2176 = vadd.f32 %v2117, %v2175
    %2177 = vdwg.mxu0
    %2178 = vst [vmem:[#allocation2] sm:$0xff] %v1657
    %vm2179 = vcmask 556032
    %2180 = vst.msk [vmem:[#allocation2 + $0x8] sm:$0xff] %vm2179, %v2129
    %2181 = vst [vmem:[#allocation2 + $0x10] sm:$0xff] %v1659
    %2182 = vst.msk [vmem:[#allocation2 + $0x18] sm:$0xff] %vm2179, %v2131
    %2183 = vst [vmem:[#allocation2 + $0x20] sm:$0xff] %v1662
    %2184 = vst.msk [vmem:[#allocation2 + $0x28] sm:$0xff] %vm2179, %v2134
    %2185 = vst [vmem:[#allocation2 + $0x30] sm:$0xff] %v1664
    %2186 = vst.msk [vmem:[#allocation2 + $0x38] sm:$0xff] %vm2179, %v2136
    %2187 = vst [vmem:[#allocation2 + $0x40] sm:$0xff] %v1667
    %2188 = vst.msk [vmem:[#allocation2 + $0x48] sm:$0xff] %vm2179, %v2139
    %2189 = vst [vmem:[#allocation2 + $0x50] sm:$0xff] %v1669
    %2190 = vst.msk [vmem:[#allocation2 + $0x58] sm:$0xff] %vm2179, %v2141
    %2191 = vst [vmem:[#allocation2 + $0x60] sm:$0xff] %v1672
    %2192 = vst.msk [vmem:[#allocation2 + $0x68] sm:$0xff] %vm2179, %v2144
    %2193 = vst [vmem:[#allocation2 + $0x70] sm:$0xff] %v1674
    %2194 = vst.msk [vmem:[#allocation2 + $0x78] sm:$0xff] %vm2179, %v2146
    %2195 = vst [vmem:[#allocation2 + $0x80] sm:$0xff] %v1677
    %2196 = vst.msk [vmem:[#allocation2 + $0x88] sm:$0xff] %vm2179, %v2149
    %2197 = vst [vmem:[#allocation2 + $0x90] sm:$0xff] %v1679
    %2198 = vst.msk [vmem:[#allocation2 + $0x98] sm:$0xff] %vm2179, %v2151
    %2199 = vst [vmem:[#allocation2 + $0xa0] sm:$0xff] %v1682
    %2200 = vst.msk [vmem:[#allocation2 + $0xa8] sm:$0xff] %vm2179, %v2154
    %2201 = vst [vmem:[#allocation2 + $0xb0] sm:$0xff] %v1684
    %2202 = vst.msk [vmem:[#allocation2 + $0xb8] sm:$0xff] %vm2179, %v2156
    %2203 = vst [vmem:[#allocation2 + $0xc0] sm:$0xff] %v1687
    %2204 = vst.msk [vmem:[#allocation2 + $0xc8] sm:$0xff] %vm2179, %v2159
    %2205 = vst [vmem:[#allocation2 + $0xd0] sm:$0xff] %v1689
    %2206 = vst.msk [vmem:[#allocation2 + $0xd8] sm:$0xff] %vm2179, %v2161
    %2207 = vst [vmem:[#allocation2 + $0xe0] sm:$0xff] %v1692
    %2208 = vst.msk [vmem:[#allocation2 + $0xe8] sm:$0xff] %vm2179, %v2164
    %2209 = vst [vmem:[#allocation2 + $0xf0] sm:$0xff] %v1694
    %2210 = vst.msk [vmem:[#allocation2 + $0xf8] sm:$0xff] %vm2179, %v2166
    %2211 = vst [vmem:[#allocation2 + $0x100] sm:$0xff] %v1697
    %2212 = vst.msk [vmem:[#allocation2 + $0x108] sm:$0xff] %vm2179, %v2169
    %2213 = vst [vmem:[#allocation2 + $0x110] sm:$0xff] %v1699
    %2214 = vst.msk [vmem:[#allocation2 + $0x118] sm:$0xff] %vm2179, %v2171
    %2215 = vst [vmem:[#allocation2 + $0x120] sm:$0xff] %v1702
    %2216 = vst.msk [vmem:[#allocation2 + $0x128] sm:$0xff] %vm2179, %v2174
    %2217 = vst [vmem:[#allocation2 + $0x130] sm:$0xff] %v1704
    %2218 = vst.msk [vmem:[#allocation2 + $0x138] sm:$0xff] %vm2179, %v2176
    // Predicated region
    $region10: #{tpu_custom_call.1} parent=1 // pred_check
      _
    $region11: #{tpu_custom_call.1} parent=1 // pred_check_branch
      %2220 = sbr.rel (0) target = $region13
    $region12: #{tpu_custom_call.1} parent=1 // pred_region
      %2222 = vsyncadd [#allocation3], 0
      %s2223 = sshll.u32 [#allocation2], 4
      %s2224 = int_to_ptr.vmem [resolvable:$true] %s2223
      %s2225 = sshll.u32 %s2, 4
      %s2226 = int_to_ptr.hbm [resolvable:$true] %s2225
      %2231 = dma.vmem_to_hbm [thread:$0]  %s2224, 5120, %s2226, [#allocation3], 256, 256, 16
    $region13: #{tpu_custom_call.1} parent=1 // pred_fallthru
      _
    // Predicated region
    $region14: #{tpu_custom_call.1} parent=1 // pred_check
      _
    $region15: #{tpu_custom_call.1} parent=1 // pred_check_branch
      %2233 = sbr.rel (0) target = $region17
    $region16: #{tpu_custom_call.1} parent=1 // pred_region
      %2235 = dma.done [#allocation3], 5120
    $region17: #{tpu_custom_call.1} parent=1 // pred_fallthru
      _
    %2236 = vsyncpa [#allocation3], 1

</llo_original>
